<compile_context>
chip_gen: v6e
topology: v6e:2x2x1
jax: 0.10.0
libtpu: 0.0.40
codegen_flags: <defaults>
</compile_context>

<pallas_src>
import functools

import jax
import jax.numpy as jnp
from jax.experimental import pallas as pl
from jax.experimental.pallas import tpu as pltpu

LANE = 128
SUBLANE = 8
NEG_BIG = -1e30                  # finite "minus infinity" for padded tag columns
GATE_PERM = (0, 1, 3, 2)         # torch gate order i|f|g|o  ->  kernel order i|f|o|g


def _round_up(x, m):
    return ((x + m - 1) // m) * m


def lstm_tagger_kernel(sent_ref, emb_ref, w_ih_ref, w_hh_ref, b_ref, w_out_ref, b_out_ref,
                       out_ref, emb_s_ref, xw_ref, hs_ref):
    seq = emb_s_ref.shape[0]          # compile-time Python int
    Hp = w_hh_ref.shape[0]            # padded hidden size (multiple of 128)

    # --- In-kernel embedding gather: sentence indices are scalars in SMEM. ---
    for t in range(seq):
        emb_s_ref[pl.ds(t, 1), :] = emb_ref[pl.ds(sent_ref[t], 1), :]

    # --- Hoisted input projection for ALL timesteps (combined bias folded in): one MXU op. ---
    xw_ref[...] = (jnp.dot(emb_s_ref[...].astype(jnp.bfloat16), w_ih_ref[...],
                           preferred_element_type=jnp.float32) + b_ref[...])   # (seq, 4Hp) f32

    w_hh = w_hh_ref[...]              # (Hp, 4Hp) bf16, resident across the unrolled loop

    # Initial hidden / cell state = zeros (matches torch default when no hidden is passed).
    h = jnp.zeros((1, Hp), jnp.float32)
    c = jnp.zeros((1, Hp), jnp.float32)

    # --- Fully unrolled recurrence: one small bf16 matmul + f32 gate math per step. ---
    for t in range(seq):
        gates = xw_ref[pl.ds(t, 1), :] + jnp.dot(
            h.astype(w_hh.dtype), w_hh, preferred_element_type=jnp.float32)    # (1, 4Hp)

        # Gate layout i|f|o|g: the three sigmoids collapse into ONE contiguous EUP region.
        sig = jax.nn.sigmoid(gates[:, :3 * Hp])
        i = sig[:, 0 * Hp:1 * Hp]
        f = sig[:, 1 * Hp:2 * Hp]
        o = sig[:, 2 * Hp:3 * Hp]
        g = jnp.tanh(gates[:, 3 * Hp:4 * Hp])

        c = f * c + i * g
        h = o * jnp.tanh(c)
        hs_ref[pl.ds(t, 1), :] = h    # stash for the deferred projection (off the dep chain)

    # --- Deferred hidden2tag + log_softmax: one batched matmul, one lane-dense slab store. ---
    tags = (jnp.dot(hs_ref[...].astype(w_out_ref.dtype), w_out_ref[...],
                    preferred_element_type=jnp.float32) + b_out_ref[...])       # (seq, Tp)
    m = jnp.max(tags, axis=-1, keepdims=True)
    lse = m + jnp.log(jnp.sum(jnp.exp(tags - m), axis=-1, keepdims=True))
    out_ref[...] = tags - lse         # padded tag columns carry ~NEG_BIG; sliced off outside


def prepare_params(params):
    """One-time weight prep (transpose / gate-reorder / pad / bf16 cast). Call ONCE."""
    emb_table, w_ih, w_hh, b_ih, b_hh, w_out, b_out = params
    V, E = emb_table.shape
    H = w_hh.shape[1]
    T = w_out.shape[0]
    Ep = _round_up(E, LANE)
    Hp = _round_up(H, LANE)
    Tp = _round_up(T, LANE)
    Vp = _round_up(V, SUBLANE)
    perm = jnp.array(GATE_PERM)

    emb_p = jnp.pad(emb_table.astype(jnp.float32), ((0, Vp - V), (0, Ep - E)))   # (Vp, Ep)

    def pad_gates(w_t, rows, rows_p):
        # (rows, 4H) torch order i|f|g|o  ->  (rows_p, 4*Hp) kernel order i|f|o|g,
        # each gate block lane-aligned at column k*Hp, padded lanes exactly 0.
        w4 = jnp.take(w_t.reshape(rows, 4, H), perm, axis=1)
        w4 = jnp.pad(w4, ((0, rows_p - rows), (0, 0), (0, Hp - H)))
        return w4.reshape(rows_p, 4 * Hp)

    w_ih_p = pad_gates(jnp.transpose(w_ih), E, Ep).astype(jnp.bfloat16)           # (Ep, 4Hp)
    w_hh_p = pad_gates(jnp.transpose(w_hh), H, Hp).astype(jnp.bfloat16)           # (Hp, 4Hp)
    b4 = jnp.take((b_ih + b_hh).reshape(4, H), perm, axis=0)
    b_p = jnp.pad(b4, ((0, 0), (0, Hp - H))).reshape(1, 4 * Hp).astype(jnp.float32)  # (1, 4Hp)

    w_out_p = jnp.pad(jnp.transpose(w_out),
                      ((0, Hp - H), (0, Tp - T))).astype(jnp.bfloat16)             # (Hp, Tp)
    b_out_p = jnp.full((1, Tp), NEG_BIG, jnp.float32).at[0, :T].set(
        b_out.astype(jnp.float32))                                                # (1, Tp)

    return (emb_p, w_ih_p, w_hh_p, b_p, w_out_p, b_out_p)


@functools.partial(jax.jit, static_argnames=("tagset_size",))
def lstm_tagger_forward(sentence, prepped, *, tagset_size):
    """sentence: (seq,) int32. Returns (seq, tagset_size) f32 log-probs."""
    emb_p, w_ih_p, w_hh_p, b_p, w_out_p, b_out_p = prepped
    seq = sentence.shape[0]
    Ep = emb_p.shape[1]
    Hp = w_hh_p.shape[0]
    Tp = w_out_p.shape[1]

    smem = pl.BlockSpec(memory_space=pltpu.MemorySpace.SMEM)
    vmem = pl.BlockSpec(memory_space=pltpu.MemorySpace.VMEM)

    out_p = pl.pallas_call(
        lstm_tagger_kernel,
        out_shape=jax.ShapeDtypeStruct((seq, Tp), jnp.float32),
        in_specs=[smem] + [vmem] * 6,
        out_specs=vmem,
        scratch_shapes=[
            pltpu.VMEM((seq, Ep), jnp.float32),       # gathered embeddings
            pltpu.VMEM((seq, 4 * Hp), jnp.float32),   # hoisted X @ W_ih + b
            pltpu.VMEM((seq, Hp), jnp.float32),       # per-step hidden states
        ],
    )(sentence.astype(jnp.int32), emb_p, w_ih_p, w_hh_p, b_p, w_out_p, b_out_p)

    return out_p[:, :tagset_size]


def init_params(key, embedding_dim, hidden_dim, vocab_size, tagset_size):
    ks = jax.random.split(key, 7)
    s = 1.0 / jnp.sqrt(hidden_dim)
    emb_table = jax.random.normal(ks[0], (vocab_size, embedding_dim), jnp.float32)
    w_ih = jax.random.uniform(ks[1], (4 * hidden_dim, embedding_dim), jnp.float32, -s, s)
    w_hh = jax.random.uniform(ks[2], (4 * hidden_dim, hidden_dim), jnp.float32, -s, s)
    b_ih = jax.random.uniform(ks[3], (4 * hidden_dim,), jnp.float32, -s, s)
    b_hh = jax.random.uniform(ks[4], (4 * hidden_dim,), jnp.float32, -s, s)
    w_out = jax.random.uniform(ks[5], (tagset_size, hidden_dim), jnp.float32, -s, s)
    b_out = jax.random.uniform(ks[6], (tagset_size,), jnp.float32, -s, s)
    return (emb_table, w_ih, w_hh, b_ih, b_hh, w_out, b_out)


def _reference_forward(sentence, params):
    """Pure-JAX (f32) reference mirroring the PyTorch forward (torch gate order i|f|g|o)."""
    emb_table, w_ih, w_hh, b_ih, b_hh, w_out, b_out = params
    H = w_hh.shape[1]
    embeds = jnp.take(emb_table, sentence, axis=0)

    def step(carry, x_t):
        h, c = carry
        gates = x_t @ w_ih.T + b_ih + h @ w_hh.T + b_hh
        i = jax.nn.sigmoid(gates[0 * H:1 * H])
        f = jax.nn.sigmoid(gates[1 * H:2 * H])
        g = jnp.tanh(gates[2 * H:3 * H])
        o = jax.nn.sigmoid(gates[3 * H:4 * H])
        c = f * c + i * g
        h = o * jnp.tanh(c)
        return (h, c), h

    (_, _), hs = jax.lax.scan(step, (jnp.zeros(H), jnp.zeros(H)), embeds)
    tag_space = hs @ w_out.T + b_out
    return jax.nn.log_softmax(tag_space, axis=1)


if __name__ == "__main__":
    EMBEDDING_DIM = 32
    HIDDEN_DIM = 32
    VOCAB_SIZE = 50
    TAGSET_SIZE = 8
    SEQ_LEN = 8

    key = jax.random.PRNGKey(0)
    pkey, skey = jax.random.split(key)
    params = init_params(pkey, EMBEDDING_DIM, HIDDEN_DIM, VOCAB_SIZE, TAGSET_SIZE)
    sentence = jax.random.randint(skey, (SEQ_LEN,), 0, VOCAB_SIZE, dtype=jnp.int32)

    # One-time weight prep (off the per-call path).
    prepped = jax.block_until_ready(prepare_params(params))

    tag_scores = jax.block_until_ready(
        lstm_tagger_forward(sentence, prepped, tagset_size=TAGSET_SIZE))
    ref_scores = jax.block_until_ready(_reference_forward(sentence, params))

    assert tag_scores.shape == (SEQ_LEN, TAGSET_SIZE)
    # Tolerance reflects bf16 MXU operands in the kernel; gate elementwise math stays f32.
    max_err = float(jnp.max(jnp.abs(tag_scores - ref_scores)))
    assert jnp.allclose(tag_scores, ref_scores, atol=3e-2, rtol=3e-2), (
        f"Pallas kernel output mismatch vs reference (max abs err {max_err:.4e})")
    print("KERNEL_OK")
</pallas_src>

<mosaic_0001>
module attributes {stable_mosaic.version = 11 : i64} {
  func.func @lstm_tagger_kernel(%arg0: memref<8xi32, #tpu.memory_space<smem>>, %arg1: memref<56x128xf32, #tpu.memory_space<vmem>>, %arg2: memref<128x512xbf16, #tpu.memory_space<vmem>>, %arg3: memref<128x512xbf16, #tpu.memory_space<vmem>>, %arg4: memref<1x512xf32, #tpu.memory_space<vmem>>, %arg5: memref<128x128xbf16, #tpu.memory_space<vmem>>, %arg6: memref<1x128xf32, #tpu.memory_space<vmem>>, %arg7: memref<8x128xf32, #tpu.memory_space<vmem>>, %arg8: memref<8x128xf32, #tpu.memory_space<vmem>>, %arg9: memref<8x512xf32, #tpu.memory_space<vmem>>, %arg10: memref<8x128xf32, #tpu.memory_space<vmem>>) attributes {dimension_semantics = [], scalar_prefetch = 0 : i64, scratch_operands = 3 : i64, tpu.core_type = #tpu.core_type<tc>} {
    %c0 = arith.constant 0 : index
    %0 = memref.load %arg0[%c0] : memref<8xi32, #tpu.memory_space<smem>>
    %1 = arith.index_cast %0 : i32 to index
    %c0_0 = arith.constant 0 : index
    %2 = vector.load %arg1[%1, %c0_0] : memref<56x128xf32, #tpu.memory_space<vmem>>, vector<1x128xf32>
    %c0_1 = arith.constant 0 : index
    %c0_2 = arith.constant 0 : index
    %3 = vector.load %arg8[%c0_1, %c0_2] : memref<8x128xf32, #tpu.memory_space<vmem>>, vector<1x128xf32>
    tpu.vector_store %arg8[%c0_1, %c0_2], %2 {strides = array<i32>} : memref<8x128xf32, #tpu.memory_space<vmem>>, vector<1x128xf32>,
    %c1 = arith.constant 1 : index
    %4 = memref.load %arg0[%c1] : memref<8xi32, #tpu.memory_space<smem>>
    %5 = arith.index_cast %4 : i32 to index
    %c0_3 = arith.constant 0 : index
    %6 = vector.load %arg1[%5, %c0_3] : memref<56x128xf32, #tpu.memory_space<vmem>>, vector<1x128xf32>
    %c1_4 = arith.constant 1 : index
    %c0_5 = arith.constant 0 : index
    %7 = vector.load %arg8[%c1_4, %c0_5] : memref<8x128xf32, #tpu.memory_space<vmem>>, vector<1x128xf32>
    tpu.vector_store %arg8[%c1_4, %c0_5], %6 {strides = array<i32>} : memref<8x128xf32, #tpu.memory_space<vmem>>, vector<1x128xf32>,
    %c2 = arith.constant 2 : index
    %8 = memref.load %arg0[%c2] : memref<8xi32, #tpu.memory_space<smem>>
    %9 = arith.index_cast %8 : i32 to index
    %c0_6 = arith.constant 0 : index
    %10 = vector.load %arg1[%9, %c0_6] : memref<56x128xf32, #tpu.memory_space<vmem>>, vector<1x128xf32>
    %c2_7 = arith.constant 2 : index
    %c0_8 = arith.constant 0 : index
    %11 = vector.load %arg8[%c2_7, %c0_8] : memref<8x128xf32, #tpu.memory_space<vmem>>, vector<1x128xf32>
    tpu.vector_store %arg8[%c2_7, %c0_8], %10 {strides = array<i32>} : memref<8x128xf32, #tpu.memory_space<vmem>>, vector<1x128xf32>,
    %c3 = arith.constant 3 : index
    %12 = memref.load %arg0[%c3] : memref<8xi32, #tpu.memory_space<smem>>
    %13 = arith.index_cast %12 : i32 to index
    %c0_9 = arith.constant 0 : index
    %14 = vector.load %arg1[%13, %c0_9] : memref<56x128xf32, #tpu.memory_space<vmem>>, vector<1x128xf32>
    %c3_10 = arith.constant 3 : index
    %c0_11 = arith.constant 0 : index
    %15 = vector.load %arg8[%c3_10, %c0_11] : memref<8x128xf32, #tpu.memory_space<vmem>>, vector<1x128xf32>
    tpu.vector_store %arg8[%c3_10, %c0_11], %14 {strides = array<i32>} : memref<8x128xf32, #tpu.memory_space<vmem>>, vector<1x128xf32>,
    %c4 = arith.constant 4 : index
    %16 = memref.load %arg0[%c4] : memref<8xi32, #tpu.memory_space<smem>>
    %17 = arith.index_cast %16 : i32 to index
    %c0_12 = arith.constant 0 : index
    %18 = vector.load %arg1[%17, %c0_12] : memref<56x128xf32, #tpu.memory_space<vmem>>, vector<1x128xf32>
    %c4_13 = arith.constant 4 : index
    %c0_14 = arith.constant 0 : index
    %19 = vector.load %arg8[%c4_13, %c0_14] : memref<8x128xf32, #tpu.memory_space<vmem>>, vector<1x128xf32>
    tpu.vector_store %arg8[%c4_13, %c0_14], %18 {strides = array<i32>} : memref<8x128xf32, #tpu.memory_space<vmem>>, vector<1x128xf32>,
    %c5 = arith.constant 5 : index
    %20 = memref.load %arg0[%c5] : memref<8xi32, #tpu.memory_space<smem>>
    %21 = arith.index_cast %20 : i32 to index
    %c0_15 = arith.constant 0 : index
    %22 = vector.load %arg1[%21, %c0_15] : memref<56x128xf32, #tpu.memory_space<vmem>>, vector<1x128xf32>
    %c5_16 = arith.constant 5 : index
    %c0_17 = arith.constant 0 : index
    %23 = vector.load %arg8[%c5_16, %c0_17] : memref<8x128xf32, #tpu.memory_space<vmem>>, vector<1x128xf32>
    tpu.vector_store %arg8[%c5_16, %c0_17], %22 {strides = array<i32>} : memref<8x128xf32, #tpu.memory_space<vmem>>, vector<1x128xf32>,
    %c6 = arith.constant 6 : index
    %24 = memref.load %arg0[%c6] : memref<8xi32, #tpu.memory_space<smem>>
    %25 = arith.index_cast %24 : i32 to index
    %c0_18 = arith.constant 0 : index
    %26 = vector.load %arg1[%25, %c0_18] : memref<56x128xf32, #tpu.memory_space<vmem>>, vector<1x128xf32>
    %c6_19 = arith.constant 6 : index
    %c0_20 = arith.constant 0 : index
    %27 = vector.load %arg8[%c6_19, %c0_20] : memref<8x128xf32, #tpu.memory_space<vmem>>, vector<1x128xf32>
    tpu.vector_store %arg8[%c6_19, %c0_20], %26 {strides = array<i32>} : memref<8x128xf32, #tpu.memory_space<vmem>>, vector<1x128xf32>,
    %c7 = arith.constant 7 : index
    %28 = memref.load %arg0[%c7] : memref<8xi32, #tpu.memory_space<smem>>
    %29 = arith.index_cast %28 : i32 to index
    %c0_21 = arith.constant 0 : index
    %30 = vector.load %arg1[%29, %c0_21] : memref<56x128xf32, #tpu.memory_space<vmem>>, vector<1x128xf32>
    %c7_22 = arith.constant 7 : index
    %c0_23 = arith.constant 0 : index
    %31 = vector.load %arg8[%c7_22, %c0_23] : memref<8x128xf32, #tpu.memory_space<vmem>>, vector<1x128xf32>
    tpu.vector_store %arg8[%c7_22, %c0_23], %30 {strides = array<i32>} : memref<8x128xf32, #tpu.memory_space<vmem>>, vector<1x128xf32>,
    %c0_24 = arith.constant 0 : index
    %c0_25 = arith.constant 0 : index
    %32 = vector.load %arg8[%c0_24, %c0_25] : memref<8x128xf32, #tpu.memory_space<vmem>>, vector<8x128xf32>
    %33 = arith.truncf %32 : vector<8x128xf32> to vector<8x128xbf16>
    %c0_26 = arith.constant 0 : index
    %c0_27 = arith.constant 0 : index
    %34 = vector.load %arg2[%c0_26, %c0_27] : memref<128x512xbf16, #tpu.memory_space<vmem>>, vector<128x512xbf16>
    %cst = arith.constant dense<0.000000e+00> : vector<8x512xf32>
    %35 = tpu.matmul %33, %34, %cst {dimension_numbers = #tpu.dot_dimension_numbers<[1], [0], [0], [1], [0, 0, 1, 1], [], []>} : vector<8x128xbf16>, vector<128x512xbf16>, vector<8x512xf32> -> vector<8x512xf32>
    %c0_28 = arith.constant 0 : index
    %c0_29 = arith.constant 0 : index
    %36 = vector.load %arg4[%c0_28, %c0_29] : memref<1x512xf32, #tpu.memory_space<vmem>>, vector<1x512xf32>
    %37 = vector.broadcast %36 : vector<1x512xf32> to vector<8x512xf32>
    %38 = arith.addf %35, %37 : vector<8x512xf32>
    %c0_30 = arith.constant 0 : index
    %c0_31 = arith.constant 0 : index
    %39 = vector.load %arg9[%c0_30, %c0_31] : memref<8x512xf32, #tpu.memory_space<vmem>>, vector<8x512xf32>
    tpu.vector_store %arg9[%c0_30, %c0_31], %38 {strides = array<i32>} : memref<8x512xf32, #tpu.memory_space<vmem>>, vector<8x512xf32>,
    %c0_32 = arith.constant 0 : index
    %c0_33 = arith.constant 0 : index
    %40 = vector.load %arg3[%c0_32, %c0_33] : memref<128x512xbf16, #tpu.memory_space<vmem>>, vector<128x512xbf16>
    %cst_34 = arith.constant 0.000000e+00 : f32
    %41 = vector.broadcast %cst_34 : f32 to vector<1x128xf32>
    %cst_35 = arith.constant 0.000000e+00 : f32
    %42 = vector.broadcast %cst_35 : f32 to vector<1x128xf32>
    %c0_36 = arith.constant 0 : index
    %c0_37 = arith.constant 0 : index
    %43 = vector.load %arg9[%c0_36, %c0_37] : memref<8x512xf32, #tpu.memory_space<vmem>>, vector<1x512xf32>
    %44 = arith.truncf %41 : vector<1x128xf32> to vector<1x128xbf16>
    %cst_38 = arith.constant dense<0.000000e+00> : vector<1x512xf32>
    %45 = tpu.matmul %44, %40, %cst_38 {dimension_numbers = #tpu.dot_dimension_numbers<[1], [0], [0], [1], [0, 0, 1, 1], [], []>} : vector<1x128xbf16>, vector<128x512xbf16>, vector<1x512xf32> -> vector<1x512xf32>
    %46 = arith.addf %43, %45 : vector<1x512xf32>
    %47 = vector.extract_strided_slice %46 {offsets = [0, 0], sizes = [1, 384], strides = [1, 1]} : vector<1x512xf32> to vector<1x384xf32>
    %48 = arith.negf %47 : vector<1x384xf32>
    %49 = math.exp %48 : vector<1x384xf32>
    %cst_39 = arith.constant 1.000000e+00 : f32
    %50 = vector.broadcast %cst_39 : f32 to vector<1x384xf32>
    %51 = arith.addf %50, %49 : vector<1x384xf32>
    %52 = arith.divf %50, %51 : vector<1x384xf32>
    %53 = vector.extract_strided_slice %52 {offsets = [0, 0], sizes = [1, 128], strides = [1, 1]} : vector<1x384xf32> to vector<1x128xf32>
    %54 = vector.extract_strided_slice %52 {offsets = [0, 128], sizes = [1, 128], strides = [1, 1]} : vector<1x384xf32> to vector<1x128xf32>
    %55 = vector.extract_strided_slice %52 {offsets = [0, 256], sizes = [1, 128], strides = [1, 1]} : vector<1x384xf32> to vector<1x128xf32>
    %56 = vector.extract_strided_slice %46 {offsets = [0, 384], sizes = [1, 128], strides = [1, 1]} : vector<1x512xf32> to vector<1x128xf32>
    %57 = math.tanh %56 : vector<1x128xf32>
    %58 = arith.mulf %54, %42 : vector<1x128xf32>
    %59 = arith.mulf %53, %57 : vector<1x128xf32>
    %60 = arith.addf %58, %59 : vector<1x128xf32>
    %61 = math.tanh %60 : vector<1x128xf32>
    %62 = arith.mulf %55, %61 : vector<1x128xf32>
    %c0_40 = arith.constant 0 : index
    %c0_41 = arith.constant 0 : index
    %63 = vector.load %arg10[%c0_40, %c0_41] : memref<8x128xf32, #tpu.memory_space<vmem>>, vector<1x128xf32>
    tpu.vector_store %arg10[%c0_40, %c0_41], %62 {strides = array<i32>} : memref<8x128xf32, #tpu.memory_space<vmem>>, vector<1x128xf32>,
    %c1_42 = arith.constant 1 : index
    %c0_43 = arith.constant 0 : index
    %64 = vector.load %arg9[%c1_42, %c0_43] : memref<8x512xf32, #tpu.memory_space<vmem>>, vector<1x512xf32>
    %65 = arith.truncf %62 : vector<1x128xf32> to vector<1x128xbf16>
    %cst_44 = arith.constant dense<0.000000e+00> : vector<1x512xf32>
    %66 = tpu.matmul %65, %40, %cst_44 {dimension_numbers = #tpu.dot_dimension_numbers<[1], [0], [0], [1], [0, 0, 1, 1], [], []>} : vector<1x128xbf16>, vector<128x512xbf16>, vector<1x512xf32> -> vector<1x512xf32>
    %67 = arith.addf %64, %66 : vector<1x512xf32>
    %68 = vector.extract_strided_slice %67 {offsets = [0, 0], sizes = [1, 384], strides = [1, 1]} : vector<1x512xf32> to vector<1x384xf32>
    %69 = arith.negf %68 : vector<1x384xf32>
    %70 = math.exp %69 : vector<1x384xf32>
    %cst_45 = arith.constant 1.000000e+00 : f32
    %71 = vector.broadcast %cst_45 : f32 to vector<1x384xf32>
    %72 = arith.addf %71, %70 : vector<1x384xf32>
    %73 = arith.divf %71, %72 : vector<1x384xf32>
    %74 = vector.extract_strided_slice %73 {offsets = [0, 0], sizes = [1, 128], strides = [1, 1]} : vector<1x384xf32> to vector<1x128xf32>
    %75 = vector.extract_strided_slice %73 {offsets = [0, 128], sizes = [1, 128], strides = [1, 1]} : vector<1x384xf32> to vector<1x128xf32>
    %76 = vector.extract_strided_slice %73 {offsets = [0, 256], sizes = [1, 128], strides = [1, 1]} : vector<1x384xf32> to vector<1x128xf32>
    %77 = vector.extract_strided_slice %67 {offsets = [0, 384], sizes = [1, 128], strides = [1, 1]} : vector<1x512xf32> to vector<1x128xf32>
    %78 = math.tanh %77 : vector<1x128xf32>
    %79 = arith.mulf %75, %60 : vector<1x128xf32>
    %80 = arith.mulf %74, %78 : vector<1x128xf32>
    %81 = arith.addf %79, %80 : vector<1x128xf32>
    %82 = math.tanh %81 : vector<1x128xf32>
    %83 = arith.mulf %76, %82 : vector<1x128xf32>
    %c1_46 = arith.constant 1 : index
    %c0_47 = arith.constant 0 : index
    %84 = vector.load %arg10[%c1_46, %c0_47] : memref<8x128xf32, #tpu.memory_space<vmem>>, vector<1x128xf32>
    tpu.vector_store %arg10[%c1_46, %c0_47], %83 {strides = array<i32>} : memref<8x128xf32, #tpu.memory_space<vmem>>, vector<1x128xf32>,
    %c2_48 = arith.constant 2 : index
    %c0_49 = arith.constant 0 : index
    %85 = vector.load %arg9[%c2_48, %c0_49] : memref<8x512xf32, #tpu.memory_space<vmem>>, vector<1x512xf32>
    %86 = arith.truncf %83 : vector<1x128xf32> to vector<1x128xbf16>
    %cst_50 = arith.constant dense<0.000000e+00> : vector<1x512xf32>
    %87 = tpu.matmul %86, %40, %cst_50 {dimension_numbers = #tpu.dot_dimension_numbers<[1], [0], [0], [1], [0, 0, 1, 1], [], []>} : vector<1x128xbf16>, vector<128x512xbf16>, vector<1x512xf32> -> vector<1x512xf32>
    %88 = arith.addf %85, %87 : vector<1x512xf32>
    %89 = vector.extract_strided_slice %88 {offsets = [0, 0], sizes = [1, 384], strides = [1, 1]} : vector<1x512xf32> to vector<1x384xf32>
    %90 = arith.negf %89 : vector<1x384xf32>
    %91 = math.exp %90 : vector<1x384xf32>
    %cst_51 = arith.constant 1.000000e+00 : f32
    %92 = vector.broadcast %cst_51 : f32 to vector<1x384xf32>
    %93 = arith.addf %92, %91 : vector<1x384xf32>
    %94 = arith.divf %92, %93 : vector<1x384xf32>
    %95 = vector.extract_strided_slice %94 {offsets = [0, 0], sizes = [1, 128], strides = [1, 1]} : vector<1x384xf32> to vector<1x128xf32>
    %96 = vector.extract_strided_slice %94 {offsets = [0, 128], sizes = [1, 128], strides = [1, 1]} : vector<1x384xf32> to vector<1x128xf32>
    %97 = vector.extract_strided_slice %94 {offsets = [0, 256], sizes = [1, 128], strides = [1, 1]} : vector<1x384xf32> to vector<1x128xf32>
    %98 = vector.extract_strided_slice %88 {offsets = [0, 384], sizes = [1, 128], strides = [1, 1]} : vector<1x512xf32> to vector<1x128xf32>
    %99 = math.tanh %98 : vector<1x128xf32>
    %100 = arith.mulf %96, %81 : vector<1x128xf32>
    %101 = arith.mulf %95, %99 : vector<1x128xf32>
    %102 = arith.addf %100, %101 : vector<1x128xf32>
    %103 = math.tanh %102 : vector<1x128xf32>
    %104 = arith.mulf %97, %103 : vector<1x128xf32>
    %c2_52 = arith.constant 2 : index
    %c0_53 = arith.constant 0 : index
    %105 = vector.load %arg10[%c2_52, %c0_53] : memref<8x128xf32, #tpu.memory_space<vmem>>, vector<1x128xf32>
    tpu.vector_store %arg10[%c2_52, %c0_53], %104 {strides = array<i32>} : memref<8x128xf32, #tpu.memory_space<vmem>>, vector<1x128xf32>,
    %c3_54 = arith.constant 3 : index
    %c0_55 = arith.constant 0 : index
    %106 = vector.load %arg9[%c3_54, %c0_55] : memref<8x512xf32, #tpu.memory_space<vmem>>, vector<1x512xf32>
    %107 = arith.truncf %104 : vector<1x128xf32> to vector<1x128xbf16>
    %cst_56 = arith.constant dense<0.000000e+00> : vector<1x512xf32>
    %108 = tpu.matmul %107, %40, %cst_56 {dimension_numbers = #tpu.dot_dimension_numbers<[1], [0], [0], [1], [0, 0, 1, 1], [], []>} : vector<1x128xbf16>, vector<128x512xbf16>, vector<1x512xf32> -> vector<1x512xf32>
    %109 = arith.addf %106, %108 : vector<1x512xf32>
    %110 = vector.extract_strided_slice %109 {offsets = [0, 0], sizes = [1, 384], strides = [1, 1]} : vector<1x512xf32> to vector<1x384xf32>
    %111 = arith.negf %110 : vector<1x384xf32>
    %112 = math.exp %111 : vector<1x384xf32>
    %cst_57 = arith.constant 1.000000e+00 : f32
    %113 = vector.broadcast %cst_57 : f32 to vector<1x384xf32>
    %114 = arith.addf %113, %112 : vector<1x384xf32>
    %115 = arith.divf %113, %114 : vector<1x384xf32>
    %116 = vector.extract_strided_slice %115 {offsets = [0, 0], sizes = [1, 128], strides = [1, 1]} : vector<1x384xf32> to vector<1x128xf32>
    %117 = vector.extract_strided_slice %115 {offsets = [0, 128], sizes = [1, 128], strides = [1, 1]} : vector<1x384xf32> to vector<1x128xf32>
    %118 = vector.extract_strided_slice %115 {offsets = [0, 256], sizes = [1, 128], strides = [1, 1]} : vector<1x384xf32> to vector<1x128xf32>
    %119 = vector.extract_strided_slice %109 {offsets = [0, 384], sizes = [1, 128], strides = [1, 1]} : vector<1x512xf32> to vector<1x128xf32>
    %120 = math.tanh %119 : vector<1x128xf32>
    %121 = arith.mulf %117, %102 : vector<1x128xf32>
    %122 = arith.mulf %116, %120 : vector<1x128xf32>
    %123 = arith.addf %121, %122 : vector<1x128xf32>
    %124 = math.tanh %123 : vector<1x128xf32>
    %125 = arith.mulf %118, %124 : vector<1x128xf32>
    %c3_58 = arith.constant 3 : index
    %c0_59 = arith.constant 0 : index
    %126 = vector.load %arg10[%c3_58, %c0_59] : memref<8x128xf32, #tpu.memory_space<vmem>>, vector<1x128xf32>
    tpu.vector_store %arg10[%c3_58, %c0_59], %125 {strides = array<i32>} : memref<8x128xf32, #tpu.memory_space<vmem>>, vector<1x128xf32>,
    %c4_60 = arith.constant 4 : index
    %c0_61 = arith.constant 0 : index
    %127 = vector.load %arg9[%c4_60, %c0_61] : memref<8x512xf32, #tpu.memory_space<vmem>>, vector<1x512xf32>
    %128 = arith.truncf %125 : vector<1x128xf32> to vector<1x128xbf16>
    %cst_62 = arith.constant dense<0.000000e+00> : vector<1x512xf32>
    %129 = tpu.matmul %128, %40, %cst_62 {dimension_numbers = #tpu.dot_dimension_numbers<[1], [0], [0], [1], [0, 0, 1, 1], [], []>} : vector<1x128xbf16>, vector<128x512xbf16>, vector<1x512xf32> -> vector<1x512xf32>
    %130 = arith.addf %127, %129 : vector<1x512xf32>
    %131 = vector.extract_strided_slice %130 {offsets = [0, 0], sizes = [1, 384], strides = [1, 1]} : vector<1x512xf32> to vector<1x384xf32>
    %132 = arith.negf %131 : vector<1x384xf32>
    %133 = math.exp %132 : vector<1x384xf32>
    %cst_63 = arith.constant 1.000000e+00 : f32
    %134 = vector.broadcast %cst_63 : f32 to vector<1x384xf32>
    %135 = arith.addf %134, %133 : vector<1x384xf32>
    %136 = arith.divf %134, %135 : vector<1x384xf32>
    %137 = vector.extract_strided_slice %136 {offsets = [0, 0], sizes = [1, 128], strides = [1, 1]} : vector<1x384xf32> to vector<1x128xf32>
    %138 = vector.extract_strided_slice %136 {offsets = [0, 128], sizes = [1, 128], strides = [1, 1]} : vector<1x384xf32> to vector<1x128xf32>
    %139 = vector.extract_strided_slice %136 {offsets = [0, 256], sizes = [1, 128], strides = [1, 1]} : vector<1x384xf32> to vector<1x128xf32>
    %140 = vector.extract_strided_slice %130 {offsets = [0, 384], sizes = [1, 128], strides = [1, 1]} : vector<1x512xf32> to vector<1x128xf32>
    %141 = math.tanh %140 : vector<1x128xf32>
    %142 = arith.mulf %138, %123 : vector<1x128xf32>
    %143 = arith.mulf %137, %141 : vector<1x128xf32>
    %144 = arith.addf %142, %143 : vector<1x128xf32>
    %145 = math.tanh %144 : vector<1x128xf32>
    %146 = arith.mulf %139, %145 : vector<1x128xf32>
    %c4_64 = arith.constant 4 : index
    %c0_65 = arith.constant 0 : index
    %147 = vector.load %arg10[%c4_64, %c0_65] : memref<8x128xf32, #tpu.memory_space<vmem>>, vector<1x128xf32>
    tpu.vector_store %arg10[%c4_64, %c0_65], %146 {strides = array<i32>} : memref<8x128xf32, #tpu.memory_space<vmem>>, vector<1x128xf32>,
    %c5_66 = arith.constant 5 : index
    %c0_67 = arith.constant 0 : index
    %148 = vector.load %arg9[%c5_66, %c0_67] : memref<8x512xf32, #tpu.memory_space<vmem>>, vector<1x512xf32>
    %149 = arith.truncf %146 : vector<1x128xf32> to vector<1x128xbf16>
    %cst_68 = arith.constant dense<0.000000e+00> : vector<1x512xf32>
    %150 = tpu.matmul %149, %40, %cst_68 {dimension_numbers = #tpu.dot_dimension_numbers<[1], [0], [0], [1], [0, 0, 1, 1], [], []>} : vector<1x128xbf16>, vector<128x512xbf16>, vector<1x512xf32> -> vector<1x512xf32>
    %151 = arith.addf %148, %150 : vector<1x512xf32>
    %152 = vector.extract_strided_slice %151 {offsets = [0, 0], sizes = [1, 384], strides = [1, 1]} : vector<1x512xf32> to vector<1x384xf32>
    %153 = arith.negf %152 : vector<1x384xf32>
    %154 = math.exp %153 : vector<1x384xf32>
    %cst_69 = arith.constant 1.000000e+00 : f32
    %155 = vector.broadcast %cst_69 : f32 to vector<1x384xf32>
    %156 = arith.addf %155, %154 : vector<1x384xf32>
    %157 = arith.divf %155, %156 : vector<1x384xf32>
    %158 = vector.extract_strided_slice %157 {offsets = [0, 0], sizes = [1, 128], strides = [1, 1]} : vector<1x384xf32> to vector<1x128xf32>
    %159 = vector.extract_strided_slice %157 {offsets = [0, 128], sizes = [1, 128], strides = [1, 1]} : vector<1x384xf32> to vector<1x128xf32>
    %160 = vector.extract_strided_slice %157 {offsets = [0, 256], sizes = [1, 128], strides = [1, 1]} : vector<1x384xf32> to vector<1x128xf32>
    %161 = vector.extract_strided_slice %151 {offsets = [0, 384], sizes = [1, 128], strides = [1, 1]} : vector<1x512xf32> to vector<1x128xf32>
    %162 = math.tanh %161 : vector<1x128xf32>
    %163 = arith.mulf %159, %144 : vector<1x128xf32>
    %164 = arith.mulf %158, %162 : vector<1x128xf32>
    %165 = arith.addf %163, %164 : vector<1x128xf32>
    %166 = math.tanh %165 : vector<1x128xf32>
    %167 = arith.mulf %160, %166 : vector<1x128xf32>
    %c5_70 = arith.constant 5 : index
    %c0_71 = arith.constant 0 : index
    %168 = vector.load %arg10[%c5_70, %c0_71] : memref<8x128xf32, #tpu.memory_space<vmem>>, vector<1x128xf32>
    tpu.vector_store %arg10[%c5_70, %c0_71], %167 {strides = array<i32>} : memref<8x128xf32, #tpu.memory_space<vmem>>, vector<1x128xf32>,
    %c6_72 = arith.constant 6 : index
    %c0_73 = arith.constant 0 : index
    %169 = vector.load %arg9[%c6_72, %c0_73] : memref<8x512xf32, #tpu.memory_space<vmem>>, vector<1x512xf32>
    %170 = arith.truncf %167 : vector<1x128xf32> to vector<1x128xbf16>
    %cst_74 = arith.constant dense<0.000000e+00> : vector<1x512xf32>
    %171 = tpu.matmul %170, %40, %cst_74 {dimension_numbers = #tpu.dot_dimension_numbers<[1], [0], [0], [1], [0, 0, 1, 1], [], []>} : vector<1x128xbf16>, vector<128x512xbf16>, vector<1x512xf32> -> vector<1x512xf32>
    %172 = arith.addf %169, %171 : vector<1x512xf32>
    %173 = vector.extract_strided_slice %172 {offsets = [0, 0], sizes = [1, 384], strides = [1, 1]} : vector<1x512xf32> to vector<1x384xf32>
    %174 = arith.negf %173 : vector<1x384xf32>
    %175 = math.exp %174 : vector<1x384xf32>
    %cst_75 = arith.constant 1.000000e+00 : f32
    %176 = vector.broadcast %cst_75 : f32 to vector<1x384xf32>
    %177 = arith.addf %176, %175 : vector<1x384xf32>
    %178 = arith.divf %176, %177 : vector<1x384xf32>
    %179 = vector.extract_strided_slice %178 {offsets = [0, 0], sizes = [1, 128], strides = [1, 1]} : vector<1x384xf32> to vector<1x128xf32>
    %180 = vector.extract_strided_slice %178 {offsets = [0, 128], sizes = [1, 128], strides = [1, 1]} : vector<1x384xf32> to vector<1x128xf32>
    %181 = vector.extract_strided_slice %178 {offsets = [0, 256], sizes = [1, 128], strides = [1, 1]} : vector<1x384xf32> to vector<1x128xf32>
    %182 = vector.extract_strided_slice %172 {offsets = [0, 384], sizes = [1, 128], strides = [1, 1]} : vector<1x512xf32> to vector<1x128xf32>
    %183 = math.tanh %182 : vector<1x128xf32>
    %184 = arith.mulf %180, %165 : vector<1x128xf32>
    %185 = arith.mulf %179, %183 : vector<1x128xf32>
    %186 = arith.addf %184, %185 : vector<1x128xf32>
    %187 = math.tanh %186 : vector<1x128xf32>
    %188 = arith.mulf %181, %187 : vector<1x128xf32>
    %c6_76 = arith.constant 6 : index
    %c0_77 = arith.constant 0 : index
    %189 = vector.load %arg10[%c6_76, %c0_77] : memref<8x128xf32, #tpu.memory_space<vmem>>, vector<1x128xf32>
    tpu.vector_store %arg10[%c6_76, %c0_77], %188 {strides = array<i32>} : memref<8x128xf32, #tpu.memory_space<vmem>>, vector<1x128xf32>,
    %c7_78 = arith.constant 7 : index
    %c0_79 = arith.constant 0 : index
    %190 = vector.load %arg9[%c7_78, %c0_79] : memref<8x512xf32, #tpu.memory_space<vmem>>, vector<1x512xf32>
    %191 = arith.truncf %188 : vector<1x128xf32> to vector<1x128xbf16>
    %cst_80 = arith.constant dense<0.000000e+00> : vector<1x512xf32>
    %192 = tpu.matmul %191, %40, %cst_80 {dimension_numbers = #tpu.dot_dimension_numbers<[1], [0], [0], [1], [0, 0, 1, 1], [], []>} : vector<1x128xbf16>, vector<128x512xbf16>, vector<1x512xf32> -> vector<1x512xf32>
    %193 = arith.addf %190, %192 : vector<1x512xf32>
    %194 = vector.extract_strided_slice %193 {offsets = [0, 0], sizes = [1, 384], strides = [1, 1]} : vector<1x512xf32> to vector<1x384xf32>
    %195 = arith.negf %194 : vector<1x384xf32>
    %196 = math.exp %195 : vector<1x384xf32>
    %cst_81 = arith.constant 1.000000e+00 : f32
    %197 = vector.broadcast %cst_81 : f32 to vector<1x384xf32>
    %198 = arith.addf %197, %196 : vector<1x384xf32>
    %199 = arith.divf %197, %198 : vector<1x384xf32>
    %200 = vector.extract_strided_slice %199 {offsets = [0, 0], sizes = [1, 128], strides = [1, 1]} : vector<1x384xf32> to vector<1x128xf32>
    %201 = vector.extract_strided_slice %199 {offsets = [0, 128], sizes = [1, 128], strides = [1, 1]} : vector<1x384xf32> to vector<1x128xf32>
    %202 = vector.extract_strided_slice %199 {offsets = [0, 256], sizes = [1, 128], strides = [1, 1]} : vector<1x384xf32> to vector<1x128xf32>
    %203 = vector.extract_strided_slice %193 {offsets = [0, 384], sizes = [1, 128], strides = [1, 1]} : vector<1x512xf32> to vector<1x128xf32>
    %204 = math.tanh %203 : vector<1x128xf32>
    %205 = arith.mulf %201, %186 : vector<1x128xf32>
    %206 = arith.mulf %200, %204 : vector<1x128xf32>
    %207 = arith.addf %205, %206 : vector<1x128xf32>
    %208 = math.tanh %207 : vector<1x128xf32>
    %209 = arith.mulf %202, %208 : vector<1x128xf32>
    %c7_82 = arith.constant 7 : index
    %c0_83 = arith.constant 0 : index
    %210 = vector.load %arg10[%c7_82, %c0_83] : memref<8x128xf32, #tpu.memory_space<vmem>>, vector<1x128xf32>
    tpu.vector_store %arg10[%c7_82, %c0_83], %209 {strides = array<i32>} : memref<8x128xf32, #tpu.memory_space<vmem>>, vector<1x128xf32>,
    %c0_84 = arith.constant 0 : index
    %c0_85 = arith.constant 0 : index
    %211 = vector.load %arg10[%c0_84, %c0_85] : memref<8x128xf32, #tpu.memory_space<vmem>>, vector<8x128xf32>
    %212 = arith.truncf %211 : vector<8x128xf32> to vector<8x128xbf16>
    %c0_86 = arith.constant 0 : index
    %c0_87 = arith.constant 0 : index
    %213 = vector.load %arg5[%c0_86, %c0_87] : memref<128x128xbf16, #tpu.memory_space<vmem>>, vector<128x128xbf16>
    %cst_88 = arith.constant dense<0.000000e+00> : vector<8x128xf32>
    %214 = tpu.matmul %212, %213, %cst_88 {dimension_numbers = #tpu.dot_dimension_numbers<[1], [0], [0], [1], [0, 0, 1, 1], [], []>} : vector<8x128xbf16>, vector<128x128xbf16>, vector<8x128xf32> -> vector<8x128xf32>
    %c0_89 = arith.constant 0 : index
    %c0_90 = arith.constant 0 : index
    %215 = vector.load %arg6[%c0_89, %c0_90] : memref<1x128xf32, #tpu.memory_space<vmem>>, vector<1x128xf32>
    %216 = vector.broadcast %215 : vector<1x128xf32> to vector<8x128xf32>
    %217 = arith.addf %214, %216 : vector<8x128xf32>
    %cst_91 = arith.constant dense<0xFF800000> : vector<8xf32>
    %218 = vector.multi_reduction <maximumf>, %217, %cst_91 [1] : vector<8x128xf32> to vector<8xf32>
    %219 = vector.shape_cast %218 : vector<8xf32> to vector<8x1xf32>
    %220 = vector.broadcast %219 : vector<8x1xf32> to vector<8x128xf32>
    %221 = arith.subf %217, %220 : vector<8x128xf32>
    %222 = math.exp %221 : vector<8x128xf32>
    %cst_92 = arith.constant dense<0.000000e+00> : vector<8xf32>
    %223 = vector.multi_reduction <add>, %222, %cst_92 [1] : vector<8x128xf32> to vector<8xf32>
    %224 = vector.shape_cast %223 : vector<8xf32> to vector<8x1xf32>
    %225 = math.log %224 : vector<8x1xf32>
    %226 = arith.addf %219, %225 : vector<8x1xf32>
    %227 = vector.broadcast %226 : vector<8x1xf32> to vector<8x128xf32>
    %228 = arith.subf %217, %227 : vector<8x128xf32>
    %c0_93 = arith.constant 0 : index
    %c0_94 = arith.constant 0 : index
    %229 = vector.load %arg7[%c0_93, %c0_94] : memref<8x128xf32, #tpu.memory_space<vmem>>, vector<8x128xf32>
    tpu.vector_store %arg7[%c0_93, %c0_94], %228 {strides = array<i32>} : memref<8x128xf32, #tpu.memory_space<vmem>>, vector<8x128xf32>,
    return
  }
}

</mosaic_0001>

<llo_original>
// kernel: lstm_tagger_forward.1
$region0: #{lstm_tagger_forward.1}
  #allocation0 [shape = 'u32[]', space=smem, size = 0x4, offset = 0x4, fixed_abs, tag = 'smem constant byte address 0x4 - core index']
  #allocation1 [shape = 'u32[144,128]{1,0:T(1,128)}', space=vmem, size = 0x12000, scoped, tag = 'internal scratch']
  #allocation2 [shape = 'f32[8,128]{1,0:T(8,128)}', space=vmem, size = 0x1000, scoped, tag = 'scratch operand']
  #allocation3 [shape = 'f32[8,512]{1,0:T(8,128)}', space=vmem, size = 0x4000, scoped, tag = 'scratch operand']
  #allocation4 [shape = 'f32[8,128]{1,0:T(8,128)}', space=vmem, size = 0x1000, scoped, tag = 'scratch operand']
  %s0 = inlined_call_operand.hbm [shape: s32[8], index: 0, kind: input, shape index: {}]
  %s1 = inlined_call_operand.hbm [shape: f32[56,128], index: 1, kind: input, shape index: {}]
  %s2 = inlined_call_operand.hbm [shape: bf16[128,512], index: 2, kind: input, shape index: {}]
  %s3 = inlined_call_operand.hbm [shape: bf16[128,512], index: 3, kind: input, shape index: {}]
  %s4 = inlined_call_operand.vmem [shape: f32[1,512], index: 4, kind: input, shape index: {}]
  %s5 = inlined_call_operand.hbm [shape: bf16[128,128], index: 5, kind: input, shape index: {}]
  %s6 = inlined_call_operand.vmem [shape: f32[1,128], index: 6, kind: input, shape index: {}]
  %s7 = inlined_call_operand.hbm [shape: f32[8,128], index: 7, kind: output, shape index: {}]
  %s8 = sld [smem:[#allocation0]]
  $region58: #{lstm_tagger_forward.1} parent=0
    _
  %s10 = ssub.s32 1, %s8
  %s11 = scalar_select 0, %s10, %s8
  $region1: #{lstm_tagger_forward.1} parent=0
    #allocation5 [shape = 'u8[512]{0}', space=smem, size = 0x200, scoped, tag = 'input window, operand 0, single buffered']
    #allocation6 [shape = 's32[1]{0}', space=sflag, size = 0x4, scoped, tag = 'scoped memory for lstm_tagger_forward.1']
    #allocation7 [shape = 's32[1]{0}', space=sflag, size = 0x4, scoped, tag = 'scoped memory for lstm_tagger_forward.1']
    #allocation8 [shape = 's32[1]{0}', space=sflag, size = 0x4, scoped, tag = 'scoped memory for lstm_tagger_forward.1']
    #allocation9 [shape = 'u8[28672]{0}', space=vmem, size = 0x7000, scoped, tag = 'input window, operand 1, single buffered']
    #allocation10 [shape = 'u8[131072]{0}', space=vmem, size = 0x20000, scoped, tag = 'input window, operand 2, single buffered']
    #allocation11 [shape = 's32[1]{0}', space=sflag, size = 0x4, scoped, tag = 'scoped memory for lstm_tagger_forward.1']
    #allocation12 [shape = 'u8[131072]{0}', space=vmem, size = 0x20000, scoped, tag = 'input window, operand 3, single buffered']
    #allocation13 [shape = 'u8[32768]{0}', space=vmem, size = 0x8000, scoped, tag = 'input window, operand 5, single buffered']
    #allocation14 [shape = 's32[1]{0}', space=sflag, size = 0x4, scoped, tag = 'scoped memory for lstm_tagger_forward.1']
    #allocation15 [shape = 'u8[4096]{0}', space=vmem, size = 0x1000, scoped, tag = 'output window, operand 0, single buffered']
    %12 = vsyncpa [#allocation8], 0
    %13 = vsyncpa [#allocation6], 0
    %14 = vsyncpa [#allocation11], 0
    %15 = vsyncpa [#allocation14], 0
    %16 = vsyncpa [#allocation7], 0
    // Predicated region
    $region2: #{lstm_tagger_forward.1} parent=1 // pred_check
      _
    $region3: #{lstm_tagger_forward.1} parent=1 // pred_check_branch
      %18 = sbr.rel (0) target = $region5
    $region4: #{lstm_tagger_forward.1} parent=1 // pred_region
      %s20 = ssub.s32 16, 16
      %21 = vsyncadd [#allocation8], %s20
      %24 = dma.hbm_to_smem %s0, 16, [#allocation5], [#allocation8]
    $region5: #{lstm_tagger_forward.1} parent=1 // pred_fallthru
      _
    // Predicated region
    $region6: #{lstm_tagger_forward.1} parent=1 // pred_check
      _
    $region7: #{lstm_tagger_forward.1} parent=1 // pred_check_branch
      %26 = sbr.rel (0) target = $region9
    $region8: #{lstm_tagger_forward.1} parent=1 // pred_region
      %s28 = ssub.s32 896, 896
      %29 = vsyncadd [#allocation6], %s28
      %s30 = sshll.u32 [#allocation9], 4
      %s31 = int_to_ptr.vmem [resolvable:$true] %s30
      %36 = dma.hbm_to_vmem [thread:$0]  %s1, 896, %s31, [#allocation6], 128, 128, 8
    $region9: #{lstm_tagger_forward.1} parent=1 // pred_fallthru
      _
    // Predicated region
    $region10: #{lstm_tagger_forward.1} parent=1 // pred_check
      _
    $region11: #{lstm_tagger_forward.1} parent=1 // pred_check_branch
      %38 = sbr.rel (0) target = $region13
    $region12: #{lstm_tagger_forward.1} parent=1 // pred_region
      %s40 = ssub.s32 4096, 4096
      %41 = vsyncadd [#allocation11], %s40
      %s42 = sshll.u32 [#allocation10], 4
      %s43 = int_to_ptr.vmem [resolvable:$true] %s42
      %48 = dma.hbm_to_vmem [thread:$0]  %s2, 4096, %s43, [#allocation11], 256, 256, 16
    $region13: #{lstm_tagger_forward.1} parent=1 // pred_fallthru
      _
    // Predicated region
    $region14: #{lstm_tagger_forward.1} parent=1 // pred_check
      _
    $region15: #{lstm_tagger_forward.1} parent=1 // pred_check_branch
      %50 = sbr.rel (0) target = $region17
    $region16: #{lstm_tagger_forward.1} parent=1 // pred_region
      %s52 = ssub.s32 4096, 4096
      %53 = vsyncadd [#allocation11], %s52
      %s54 = sshll.u32 [#allocation12], 4
      %s55 = int_to_ptr.vmem [resolvable:$true] %s54
      %60 = dma.hbm_to_vmem [thread:$0]  %s3, 4096, %s55, [#allocation11], 256, 256, 16
    $region17: #{lstm_tagger_forward.1} parent=1 // pred_fallthru
      _
    // Predicated region
    $region18: #{lstm_tagger_forward.1} parent=1 // pred_check
      _
    $region19: #{lstm_tagger_forward.1} parent=1 // pred_check_branch
      %62 = sbr.rel (0) target = $region21
    $region20: #{lstm_tagger_forward.1} parent=1 // pred_region
      _
    $region21: #{lstm_tagger_forward.1} parent=1 // pred_fallthru
      _
    // Predicated region
    $region22: #{lstm_tagger_forward.1} parent=1 // pred_check
      _
    $region23: #{lstm_tagger_forward.1} parent=1 // pred_check_branch
      %64 = sbr.rel (0) target = $region25
    $region24: #{lstm_tagger_forward.1} parent=1 // pred_region
      %s66 = ssub.s32 1024, 1024
      %67 = vsyncadd [#allocation14], %s66
      %s68 = sshll.u32 [#allocation13], 4
      %s69 = int_to_ptr.vmem [resolvable:$true] %s68
      %74 = dma.hbm_to_vmem [thread:$0]  %s5, 1024, %s69, [#allocation14], 64, 64, 4
    $region25: #{lstm_tagger_forward.1} parent=1 // pred_fallthru
      _
    // Predicated region
    $region26: #{lstm_tagger_forward.1} parent=1 // pred_check
      _
    $region27: #{lstm_tagger_forward.1} parent=1 // pred_check_branch
      %76 = sbr.rel (0) target = $region29
    $region28: #{lstm_tagger_forward.1} parent=1 // pred_region
      _
    $region29: #{lstm_tagger_forward.1} parent=1 // pred_fallthru
      _
    // Predicated region
    $region30: #{lstm_tagger_forward.1} parent=1 // pred_check
      _
    $region31: #{lstm_tagger_forward.1} parent=1 // pred_check_branch
      %78 = sbr.rel (0) target = $region33
    $region32: #{lstm_tagger_forward.1} parent=1 // pred_region
      %79 = dma.done [#allocation8], 16
    $region33: #{lstm_tagger_forward.1} parent=1 // pred_fallthru
      _
    // Predicated region
    $region34: #{lstm_tagger_forward.1} parent=1 // pred_check
      _
    $region35: #{lstm_tagger_forward.1} parent=1 // pred_check_branch
      %81 = sbr.rel (0) target = $region37
    $region36: #{lstm_tagger_forward.1} parent=1 // pred_region
      %82 = dma.done [#allocation6], 896
    $region37: #{lstm_tagger_forward.1} parent=1 // pred_fallthru
      _
    // Predicated region
    $region38: #{lstm_tagger_forward.1} parent=1 // pred_check
      _
    $region39: #{lstm_tagger_forward.1} parent=1 // pred_check_branch
      %84 = sbr.rel (0) target = $region41
    $region40: #{lstm_tagger_forward.1} parent=1 // pred_region
      %85 = dma.done [#allocation11], 4096
    $region41: #{lstm_tagger_forward.1} parent=1 // pred_fallthru
      _
    // Predicated region
    $region42: #{lstm_tagger_forward.1} parent=1 // pred_check
      _
    $region43: #{lstm_tagger_forward.1} parent=1 // pred_check_branch
      %87 = sbr.rel (0) target = $region45
    $region44: #{lstm_tagger_forward.1} parent=1 // pred_region
      %88 = dma.done [#allocation11], 4096
    $region45: #{lstm_tagger_forward.1} parent=1 // pred_fallthru
      _
    // Predicated region
    $region46: #{lstm_tagger_forward.1} parent=1 // pred_check
      _
    $region47: #{lstm_tagger_forward.1} parent=1 // pred_check_branch
      %90 = sbr.rel (0) target = $region49
    $region48: #{lstm_tagger_forward.1} parent=1 // pred_region
      %91 = dma.done [#allocation14], 1024
    $region49: #{lstm_tagger_forward.1} parent=1 // pred_fallthru
      _
    %92 = sfence
    %s94 = sld [smem:[#allocation5]]
    %s95 = scalar_lea.vmem [#allocation9], %s94
    %v96 = vld [vmem:[%s95] sm:$0x1]
    %97 = vst [vmem:[#allocation2] sm:$0x1] %v96
    %s98 = sld [smem:[#allocation5 + $0x1]]
    %s99 = scalar_lea.vmem [#allocation9], %s98
    %v100 = vld [vmem:[%s99] sm:$0x1]
    %101 = vst [vmem:[#allocation2 + $0x1] sm:$0x1] %v100
    %s102 = sld [smem:[#allocation5 + $0x2]]
    %s103 = scalar_lea.vmem [#allocation9], %s102
    %v104 = vld [vmem:[%s103] sm:$0x1]
    %105 = vst [vmem:[#allocation2 + $0x2] sm:$0x1] %v104
    %s106 = sld [smem:[#allocation5 + $0x3]]
    %s107 = scalar_lea.vmem [#allocation9], %s106
    %v108 = vld [vmem:[%s107] sm:$0x1]
    %109 = vst [vmem:[#allocation2 + $0x3] sm:$0x1] %v108
    %s110 = sld [smem:[#allocation5 + $0x4]]
    %s111 = scalar_lea.vmem [#allocation9], %s110
    %v112 = vld [vmem:[%s111] sm:$0x1]
    %113 = vst [vmem:[#allocation2 + $0x4] sm:$0x1] %v112
    %s114 = sld [smem:[#allocation5 + $0x5]]
    %s115 = scalar_lea.vmem [#allocation9], %s114
    %v116 = vld [vmem:[%s115] sm:$0x1]
    %117 = vst [vmem:[#allocation2 + $0x5] sm:$0x1] %v116
    %s118 = sld [smem:[#allocation5 + $0x6]]
    %s119 = scalar_lea.vmem [#allocation9], %s118
    %v120 = vld [vmem:[%s119] sm:$0x1]
    %121 = vst [vmem:[#allocation2 + $0x6] sm:$0x1] %v120
    %s122 = sld [smem:[#allocation5 + $0x7]]
    %s123 = scalar_lea.vmem [#allocation9], %s122
    %v124 = vld [vmem:[%s123] sm:$0x1]
    %125 = vst [vmem:[#allocation2 + $0x7] sm:$0x1] %v124
    %v126 = vld [vmem:[#allocation2] sm:$0xff]
    %v127 = vpack.c.bf16 %v126, %v126
    %v128 = vld [vmem:[#allocation10] sm:$0xff]
    %v129 = vld [vmem:[#allocation10 + $0x8] sm:$0xff]
    %v130 = vld [vmem:[#allocation10 + $0x10] sm:$0xff]
    %v131 = vld [vmem:[#allocation10 + $0x18] sm:$0xff]
    %v132 = vld [vmem:[#allocation10 + $0x20] sm:$0xff]
    %v133 = vld [vmem:[#allocation10 + $0x28] sm:$0xff]
    %v134 = vld [vmem:[#allocation10 + $0x30] sm:$0xff]
    %v135 = vld [vmem:[#allocation10 + $0x38] sm:$0xff]
    %v136 = vld [vmem:[#allocation10 + $0x40] sm:$0xff]
    %v137 = vld [vmem:[#allocation10 + $0x48] sm:$0xff]
    %v138 = vld [vmem:[#allocation10 + $0x50] sm:$0xff]
    %v139 = vld [vmem:[#allocation10 + $0x58] sm:$0xff]
    %v140 = vld [vmem:[#allocation10 + $0x60] sm:$0xff]
    %v141 = vld [vmem:[#allocation10 + $0x68] sm:$0xff]
    %v142 = vld [vmem:[#allocation10 + $0x70] sm:$0xff]
    %v143 = vld [vmem:[#allocation10 + $0x78] sm:$0xff]
    %v144 = vld [vmem:[#allocation10 + $0x80] sm:$0xff]
    %v145 = vld [vmem:[#allocation10 + $0x88] sm:$0xff]
    %v146 = vld [vmem:[#allocation10 + $0x90] sm:$0xff]
    %v147 = vld [vmem:[#allocation10 + $0x98] sm:$0xff]
    %v148 = vld [vmem:[#allocation10 + $0xa0] sm:$0xff]
    %v149 = vld [vmem:[#allocation10 + $0xa8] sm:$0xff]
    %v150 = vld [vmem:[#allocation10 + $0xb0] sm:$0xff]
    %v151 = vld [vmem:[#allocation10 + $0xb8] sm:$0xff]
    %v152 = vld [vmem:[#allocation10 + $0xc0] sm:$0xff]
    %v153 = vld [vmem:[#allocation10 + $0xc8] sm:$0xff]
    %v154 = vld [vmem:[#allocation10 + $0xd0] sm:$0xff]
    %v155 = vld [vmem:[#allocation10 + $0xd8] sm:$0xff]
    %v156 = vld [vmem:[#allocation10 + $0xe0] sm:$0xff]
    %v157 = vld [vmem:[#allocation10 + $0xe8] sm:$0xff]
    %v158 = vld [vmem:[#allocation10 + $0xf0] sm:$0xff]
    %v159 = vld [vmem:[#allocation10 + $0xf8] sm:$0xff]
    %v160 = vld [vmem:[%s4] sm:$0xf]
    %v162 = vlaneseq
    %v163 = vshrl.u32 %v162, 7
    %v164 = vsub.s32 0, %v163
    %v165 = vrot.slane %v160, %v164
    %v166 = vlaneseq
    %v167 = vshrl.u32 %v166, 7
    %v168 = vsub.s32 1, %v167
    %v169 = vrot.slane %v160, %v168
    %v170 = vlaneseq
    %v171 = vshrl.u32 %v170, 7
    %v172 = vsub.s32 2, %v171
    %v173 = vrot.slane %v160, %v172
    %v174 = vlaneseq
    %v175 = vshrl.u32 %v174, 7
    %v176 = vsub.s32 3, %v175
    %v177 = vrot.slane %v160, %v176
    %v214 = vunpack.c.l.b16 %v128
    %v215 = vunpack.c.h.b16 %v128
    %v216 = vunpack.c.l.b16 %v129
    %v217 = vunpack.c.h.b16 %v129
    %v218 = vunpack.c.l.b16 %v130
    %v219 = vunpack.c.h.b16 %v130
    %v220 = vunpack.c.l.b16 %v131
    %v221 = vunpack.c.h.b16 %v131
    %v222 = vunpack.c.l.b16 %v132
    %v223 = vunpack.c.h.b16 %v132
    %v224 = vunpack.c.l.b16 %v133
    %v225 = vunpack.c.h.b16 %v133
    %v226 = vunpack.c.l.b16 %v134
    %v227 = vunpack.c.h.b16 %v134
    %v228 = vunpack.c.l.b16 %v135
    %v229 = vunpack.c.h.b16 %v135
    %v230 = vunpack.c.l.b16 %v136
    %v231 = vunpack.c.h.b16 %v136
    %v232 = vunpack.c.l.b16 %v137
    %v233 = vunpack.c.h.b16 %v137
    %v234 = vunpack.c.l.b16 %v138
    %v235 = vunpack.c.h.b16 %v138
    %v236 = vunpack.c.l.b16 %v139
    %v237 = vunpack.c.h.b16 %v139
    %v238 = vunpack.c.l.b16 %v140
    %v239 = vunpack.c.h.b16 %v140
    %v240 = vunpack.c.l.b16 %v141
    %v241 = vunpack.c.h.b16 %v141
    %v242 = vunpack.c.l.b16 %v142
    %v243 = vunpack.c.h.b16 %v142
    %v244 = vunpack.c.l.b16 %v143
    %v245 = vunpack.c.h.b16 %v143
    %v246 = vunpack.c.l.b16 %v144
    %v247 = vunpack.c.h.b16 %v144
    %v248 = vunpack.c.l.b16 %v145
    %v249 = vunpack.c.h.b16 %v145
    %v250 = vunpack.c.l.b16 %v146
    %v251 = vunpack.c.h.b16 %v146
    %v252 = vunpack.c.l.b16 %v147
    %v253 = vunpack.c.h.b16 %v147
    %v254 = vunpack.c.l.b16 %v148
    %v255 = vunpack.c.h.b16 %v148
    %v256 = vunpack.c.l.b16 %v149
    %v257 = vunpack.c.h.b16 %v149
    %v258 = vunpack.c.l.b16 %v150
    %v259 = vunpack.c.h.b16 %v150
    %v260 = vunpack.c.l.b16 %v151
    %v261 = vunpack.c.h.b16 %v151
    %v262 = vunpack.c.l.b16 %v152
    %v263 = vunpack.c.h.b16 %v152
    %v264 = vunpack.c.l.b16 %v153
    %v265 = vunpack.c.h.b16 %v153
    %v266 = vunpack.c.l.b16 %v154
    %v267 = vunpack.c.h.b16 %v154
    %v268 = vunpack.c.l.b16 %v155
    %v269 = vunpack.c.h.b16 %v155
    %v270 = vunpack.c.l.b16 %v156
    %v271 = vunpack.c.h.b16 %v156
    %v272 = vunpack.c.l.b16 %v157
    %v273 = vunpack.c.h.b16 %v157
    %v274 = vunpack.c.l.b16 %v158
    %v275 = vunpack.c.h.b16 %v158
    %v276 = vunpack.c.l.b16 %v159
    %v277 = vunpack.c.h.b16 %v159
    %v278 = vpack.c.b16 %v218, %v214
    %v279 = vpack.c.b16 %v219, %v215
    %v280 = vpack.c.b16 %v220, %v216
    %v281 = vpack.c.b16 %v221, %v217
    %v282 = vpack.c.b16 %v226, %v222
    %v283 = vpack.c.b16 %v227, %v223
    %v284 = vpack.c.b16 %v228, %v224
    %v285 = vpack.c.b16 %v229, %v225
    %v286 = vpack.c.b16 %v234, %v230
    %v287 = vpack.c.b16 %v235, %v231
    %v288 = vpack.c.b16 %v236, %v232
    %v289 = vpack.c.b16 %v237, %v233
    %v290 = vpack.c.b16 %v242, %v238
    %v291 = vpack.c.b16 %v243, %v239
    %v292 = vpack.c.b16 %v244, %v240
    %v293 = vpack.c.b16 %v245, %v241
    %v294 = vpack.c.b16 %v250, %v246
    %v295 = vpack.c.b16 %v251, %v247
    %v296 = vpack.c.b16 %v252, %v248
    %v297 = vpack.c.b16 %v253, %v249
    %v298 = vpack.c.b16 %v258, %v254
    %v299 = vpack.c.b16 %v259, %v255
    %v300 = vpack.c.b16 %v260, %v256
    %v301 = vpack.c.b16 %v261, %v257
    %v302 = vpack.c.b16 %v266, %v262
    %v303 = vpack.c.b16 %v267, %v263
    %v304 = vpack.c.b16 %v268, %v264
    %v305 = vpack.c.b16 %v269, %v265
    %v306 = vpack.c.b16 %v274, %v270
    %v307 = vpack.c.b16 %v275, %v271
    %v308 = vpack.c.b16 %v276, %v272
    %v309 = vpack.c.b16 %v277, %v273
    %342 = vmatprep.subr.bf16.mxu0 %v307
    %343 = vmatpush1.bf16.msra.mxu0 %v306
    %344 = vmatprep.subr.bf16.mxu0 %v303
    %345 = vmatpush1.bf16.msra.mxu0 %v302
    %346 = vmatprep.subr.bf16.mxu0 %v299
    %347 = vmatpush1.bf16.msra.mxu0 %v298
    %348 = vmatprep.subr.bf16.mxu0 %v295
    %349 = vmatpush1.bf16.msra.mxu0 %v294
    %350 = vmatprep.subr.bf16.mxu0 %v291
    %351 = vmatpush1.bf16.msra.mxu0 %v290
    %352 = vmatprep.subr.bf16.mxu0 %v287
    %353 = vmatpush1.bf16.msra.mxu0 %v286
    %354 = vmatprep.subr.bf16.mxu0 %v283
    %355 = vmatpush1.bf16.msra.mxu0 %v282
    %356 = vmatprep.subr.bf16.mxu0 %v279
    %357 = vmatpush1.bf16.msra.mxu0 %v278
    %358 = vmatprep.subr.bf16.mxu0 0
    %359 = vmatpush2.bf16.msra.mxu0 0
    %360 = vmatprep.subr.bf16.mxu0 0
    %361 = vmatpush2.bf16.msra.mxu0 0
    %362 = vmatprep.subr.bf16.mxu0 0
    %363 = vmatpush2.bf16.msra.mxu0 0
    %364 = vmatprep.subr.bf16.mxu0 0
    %365 = vmatpush2.bf16.msra.mxu0 0
    %366 = vmatprep.subr.bf16.mxu0 0
    %367 = vmatpush2.bf16.msra.mxu0 0
    %368 = vmatprep.subr.bf16.mxu0 0
    %369 = vmatpush2.bf16.msra.mxu0 0
    %370 = vmatprep.subr.bf16.mxu0 0
    %371 = vmatpush2.bf16.msra.mxu0 0
    %372 = vmatprep.subr.bf16.mxu0 0
    %373 = vmatpush2.bf16.msra.mxu0 0
    %374 = vmatprep.mubr.bf16.mxu0 0
    %375 = vmatmul.mubr.bf16.gmra.mxu0 %v127
    %v376 = vpop.f32.mrf.mxu0
    %v377 = vadd.f32 %v165, %v376
    %v378 = vpop.f32.mrf.mxu0
    %v379 = vadd.f32 %v169, %v378
    %v380 = vpop.f32.mrf.mxu0
    %v381 = vpop.f32.mrf.mxu0
    %382 = vdwg.mxu0
    %383 = vmatprep.subr.bf16.mxu0 %v309
    %384 = vmatpush1.bf16.msra.mxu0 %v308
    %385 = vmatprep.subr.bf16.mxu0 %v305
    %386 = vmatpush1.bf16.msra.mxu0 %v304
    %387 = vmatprep.subr.bf16.mxu0 %v301
    %388 = vmatpush1.bf16.msra.mxu0 %v300
    %389 = vmatprep.subr.bf16.mxu0 %v297
    %390 = vmatpush1.bf16.msra.mxu0 %v296
    %391 = vmatprep.subr.bf16.mxu0 %v293
    %392 = vmatpush1.bf16.msra.mxu0 %v292
    %393 = vmatprep.subr.bf16.mxu0 %v289
    %394 = vmatpush1.bf16.msra.mxu0 %v288
    %395 = vmatprep.subr.bf16.mxu0 %v285
    %396 = vmatpush1.bf16.msra.mxu0 %v284
    %397 = vmatprep.subr.bf16.mxu0 %v281
    %398 = vmatpush1.bf16.msra.mxu0 %v280
    %399 = vmatprep.subr.bf16.mxu0 0
    %400 = vmatpush2.bf16.msra.mxu0 0
    %401 = vmatprep.subr.bf16.mxu0 0
    %402 = vmatpush2.bf16.msra.mxu0 0
    %403 = vmatprep.subr.bf16.mxu0 0
    %404 = vmatpush2.bf16.msra.mxu0 0
    %405 = vmatprep.subr.bf16.mxu0 0
    %406 = vmatpush2.bf16.msra.mxu0 0
    %407 = vmatprep.subr.bf16.mxu0 0
    %408 = vmatpush2.bf16.msra.mxu0 0
    %409 = vmatprep.subr.bf16.mxu0 0
    %410 = vmatpush2.bf16.msra.mxu0 0
    %411 = vmatprep.subr.bf16.mxu0 0
    %412 = vmatpush2.bf16.msra.mxu0 0
    %413 = vmatprep.subr.bf16.mxu0 0
    %414 = vmatpush2.bf16.msra.mxu0 0
    %415 = vmatprep.mubr.bf16.mxu0 0
    %416 = vmatmul.mubr.bf16.gmra.mxu0 %v127
    %v417 = vpop.f32.mrf.mxu0
    %v418 = vadd.f32 %v173, %v417
    %v419 = vpop.f32.mrf.mxu0
    %v420 = vadd.f32 %v177, %v419
    %v421 = vpop.f32.mrf.mxu0
    %v422 = vpop.f32.mrf.mxu0
    %423 = vdwg.mxu0
    %424 = vst [vmem:[#allocation3] sm:$0xff] %v377
    %425 = vst [vmem:[#allocation3 + $0x8] sm:$0xff] %v379
    %426 = vst [vmem:[#allocation3 + $0x10] sm:$0xff] %v418
    %427 = vst [vmem:[#allocation3 + $0x18] sm:$0xff] %v420
    %v428 = vld [vmem:[#allocation12] sm:$0xff]
    %v429 = vld [vmem:[#allocation12 + $0x8] sm:$0xff]
    %v430 = vld [vmem:[#allocation12 + $0x10] sm:$0xff]
    %v431 = vld [vmem:[#allocation12 + $0x18] sm:$0xff]
    %v432 = vld [vmem:[#allocation12 + $0x20] sm:$0xff]
    %v433 = vld [vmem:[#allocation12 + $0x28] sm:$0xff]
    %v434 = vld [vmem:[#allocation12 + $0x30] sm:$0xff]
    %v435 = vld [vmem:[#allocation12 + $0x38] sm:$0xff]
    %v436 = vld [vmem:[#allocation12 + $0x40] sm:$0xff]
    %v437 = vld [vmem:[#allocation12 + $0x48] sm:$0xff]
    %v438 = vld [vmem:[#allocation12 + $0x50] sm:$0xff]
    %v439 = vld [vmem:[#allocation12 + $0x58] sm:$0xff]
    %v440 = vld [vmem:[#allocation12 + $0x60] sm:$0xff]
    %v441 = vld [vmem:[#allocation12 + $0x68] sm:$0xff]
    %v442 = vld [vmem:[#allocation12 + $0x70] sm:$0xff]
    %v443 = vld [vmem:[#allocation12 + $0x78] sm:$0xff]
    %v444 = vld [vmem:[#allocation12 + $0x80] sm:$0xff]
    %v445 = vld [vmem:[#allocation12 + $0x88] sm:$0xff]
    %v446 = vld [vmem:[#allocation12 + $0x90] sm:$0xff]
    %v447 = vld [vmem:[#allocation12 + $0x98] sm:$0xff]
    %v448 = vld [vmem:[#allocation12 + $0xa0] sm:$0xff]
    %v449 = vld [vmem:[#allocation12 + $0xa8] sm:$0xff]
    %v450 = vld [vmem:[#allocation12 + $0xb0] sm:$0xff]
    %v451 = vld [vmem:[#allocation12 + $0xb8] sm:$0xff]
    %v452 = vld [vmem:[#allocation12 + $0xc0] sm:$0xff]
    %v453 = vld [vmem:[#allocation12 + $0xc8] sm:$0xff]
    %v454 = vld [vmem:[#allocation12 + $0xd0] sm:$0xff]
    %v455 = vld [vmem:[#allocation12 + $0xd8] sm:$0xff]
    %v456 = vld [vmem:[#allocation12 + $0xe0] sm:$0xff]
    %v457 = vld [vmem:[#allocation12 + $0xe8] sm:$0xff]
    %v458 = vld [vmem:[#allocation12 + $0xf0] sm:$0xff]
    %v459 = vld [vmem:[#allocation12 + $0xf8] sm:$0xff]
    %v460 = vld [vmem:[#allocation3] ss:$8 sm:$0xf]
    %v493 = vunpack.c.l.b16 %v428
    %v494 = vunpack.c.h.b16 %v428
    %v495 = vunpack.c.l.b16 %v429
    %v496 = vunpack.c.h.b16 %v429
    %v497 = vunpack.c.l.b16 %v430
    %v498 = vunpack.c.h.b16 %v430
    %v499 = vunpack.c.l.b16 %v431
    %v500 = vunpack.c.h.b16 %v431
    %v501 = vunpack.c.l.b16 %v432
    %v502 = vunpack.c.h.b16 %v432
    %v503 = vunpack.c.l.b16 %v433
    %v504 = vunpack.c.h.b16 %v433
    %v505 = vunpack.c.l.b16 %v434
    %v506 = vunpack.c.h.b16 %v434
    %v507 = vunpack.c.l.b16 %v435
    %v508 = vunpack.c.h.b16 %v435
    %v509 = vunpack.c.l.b16 %v436
    %v510 = vunpack.c.h.b16 %v436
    %v511 = vunpack.c.l.b16 %v437
    %v512 = vunpack.c.h.b16 %v437
    %v513 = vunpack.c.l.b16 %v438
    %v514 = vunpack.c.h.b16 %v438
    %v515 = vunpack.c.l.b16 %v439
    %v516 = vunpack.c.h.b16 %v439
    %v517 = vunpack.c.l.b16 %v440
    %v518 = vunpack.c.h.b16 %v440
    %v519 = vunpack.c.l.b16 %v441
    %v520 = vunpack.c.h.b16 %v441
    %v521 = vunpack.c.l.b16 %v442
    %v522 = vunpack.c.h.b16 %v442
    %v523 = vunpack.c.l.b16 %v443
    %v524 = vunpack.c.h.b16 %v443
    %v525 = vunpack.c.l.b16 %v444
    %v526 = vunpack.c.h.b16 %v444
    %v527 = vunpack.c.l.b16 %v445
    %v528 = vunpack.c.h.b16 %v445
    %v529 = vunpack.c.l.b16 %v446
    %v530 = vunpack.c.h.b16 %v446
    %v531 = vunpack.c.l.b16 %v447
    %v532 = vunpack.c.h.b16 %v447
    %v533 = vunpack.c.l.b16 %v448
    %v534 = vunpack.c.h.b16 %v448
    %v535 = vunpack.c.l.b16 %v449
    %v536 = vunpack.c.h.b16 %v449
    %v537 = vunpack.c.l.b16 %v450
    %v538 = vunpack.c.h.b16 %v450
    %v539 = vunpack.c.l.b16 %v451
    %v540 = vunpack.c.h.b16 %v451
    %v541 = vunpack.c.l.b16 %v452
    %v542 = vunpack.c.h.b16 %v452
    %v543 = vunpack.c.l.b16 %v453
    %v544 = vunpack.c.h.b16 %v453
    %v545 = vunpack.c.l.b16 %v454
    %v546 = vunpack.c.h.b16 %v454
    %v547 = vunpack.c.l.b16 %v455
    %v548 = vunpack.c.h.b16 %v455
    %v549 = vunpack.c.l.b16 %v456
    %v550 = vunpack.c.h.b16 %v456
    %v551 = vunpack.c.l.b16 %v457
    %v552 = vunpack.c.h.b16 %v457
    %v553 = vunpack.c.l.b16 %v458
    %v554 = vunpack.c.h.b16 %v458
    %v555 = vunpack.c.l.b16 %v459
    %v556 = vunpack.c.h.b16 %v459
    %v557 = vpack.c.b16 %v497, %v493
    %v558 = vpack.c.b16 %v498, %v494
    %v559 = vpack.c.b16 %v499, %v495
    %v560 = vpack.c.b16 %v500, %v496
    %v561 = vpack.c.b16 %v505, %v501
    %v562 = vpack.c.b16 %v506, %v502
    %v563 = vpack.c.b16 %v507, %v503
    %v564 = vpack.c.b16 %v508, %v504
    %v565 = vpack.c.b16 %v513, %v509
    %v566 = vpack.c.b16 %v514, %v510
    %v567 = vpack.c.b16 %v515, %v511
    %v568 = vpack.c.b16 %v516, %v512
    %v569 = vpack.c.b16 %v521, %v517
    %v570 = vpack.c.b16 %v522, %v518
    %v571 = vpack.c.b16 %v523, %v519
    %v572 = vpack.c.b16 %v524, %v520
    %v573 = vpack.c.b16 %v529, %v525
    %v574 = vpack.c.b16 %v530, %v526
    %v575 = vpack.c.b16 %v531, %v527
    %v576 = vpack.c.b16 %v532, %v528
    %v577 = vpack.c.b16 %v537, %v533
    %v578 = vpack.c.b16 %v538, %v534
    %v579 = vpack.c.b16 %v539, %v535
    %v580 = vpack.c.b16 %v540, %v536
    %v581 = vpack.c.b16 %v545, %v541
    %v582 = vpack.c.b16 %v546, %v542
    %v583 = vpack.c.b16 %v547, %v543
    %v584 = vpack.c.b16 %v548, %v544
    %v585 = vpack.c.b16 %v553, %v549
    %v586 = vpack.c.b16 %v554, %v550
    %v587 = vpack.c.b16 %v555, %v551
    %v588 = vpack.c.b16 %v556, %v552
    %621 = vmatprep.subr.bf16.mxu0 %v586
    %622 = vmatpush1.bf16.msra.mxu0 %v585
    %623 = vmatprep.subr.bf16.mxu0 %v582
    %624 = vmatpush1.bf16.msra.mxu0 %v581
    %625 = vmatprep.subr.bf16.mxu0 %v578
    %626 = vmatpush1.bf16.msra.mxu0 %v577
    %627 = vmatprep.subr.bf16.mxu0 %v574
    %628 = vmatpush1.bf16.msra.mxu0 %v573
    %629 = vmatprep.subr.bf16.mxu0 %v570
    %630 = vmatpush1.bf16.msra.mxu0 %v569
    %631 = vmatprep.subr.bf16.mxu0 %v566
    %632 = vmatpush1.bf16.msra.mxu0 %v565
    %633 = vmatprep.subr.bf16.mxu0 %v562
    %634 = vmatpush1.bf16.msra.mxu0 %v561
    %635 = vmatprep.subr.bf16.mxu0 %v558
    %636 = vmatpush1.bf16.msra.mxu0 %v557
    %637 = vmatprep.subr.bf16.mxu0 0
    %638 = vmatpush2.bf16.msra.mxu0 0
    %639 = vmatprep.subr.bf16.mxu0 0
    %640 = vmatpush2.bf16.msra.mxu0 0
    %641 = vmatprep.subr.bf16.mxu0 0
    %642 = vmatpush2.bf16.msra.mxu0 0
    %643 = vmatprep.subr.bf16.mxu0 0
    %644 = vmatpush2.bf16.msra.mxu0 0
    %645 = vmatprep.subr.bf16.mxu0 0
    %646 = vmatpush2.bf16.msra.mxu0 0
    %647 = vmatprep.subr.bf16.mxu0 0
    %648 = vmatpush2.bf16.msra.mxu0 0
    %649 = vmatprep.subr.bf16.mxu0 0
    %650 = vmatpush2.bf16.msra.mxu0 0
    %651 = vmatprep.subr.bf16.mxu0 0
    %652 = vmatpush2.bf16.msra.mxu0 0
    %653 = vmatprep.mubr.bf16.mxu0 0
    %654 = vmatmul.mubr.bf16.gmra.mxu0 0
    %v655 = vpop.f32.mrf.mxu0
    %v656 = vadd.f32 0.0, %v655
    %v657 = vpop.f32.mrf.mxu0
    %v658 = vadd.f32 0.0, %v657
    %v659 = vpop.f32.mrf.mxu0
    %v660 = vpop.f32.mrf.mxu0
    %661 = vdwg.mxu0
    %662 = vmatprep.subr.bf16.mxu0 %v588
    %663 = vmatpush1.bf16.msra.mxu0 %v587
    %664 = vmatprep.subr.bf16.mxu0 %v584
    %665 = vmatpush1.bf16.msra.mxu0 %v583
    %666 = vmatprep.subr.bf16.mxu0 %v580
    %667 = vmatpush1.bf16.msra.mxu0 %v579
    %668 = vmatprep.subr.bf16.mxu0 %v576
    %669 = vmatpush1.bf16.msra.mxu0 %v575
    %670 = vmatprep.subr.bf16.mxu0 %v572
    %671 = vmatpush1.bf16.msra.mxu0 %v571
    %672 = vmatprep.subr.bf16.mxu0 %v568
    %673 = vmatpush1.bf16.msra.mxu0 %v567
    %674 = vmatprep.subr.bf16.mxu0 %v564
    %675 = vmatpush1.bf16.msra.mxu0 %v563
    %676 = vmatprep.subr.bf16.mxu0 %v560
    %677 = vmatpush1.bf16.msra.mxu0 %v559
    %678 = vmatprep.subr.bf16.mxu0 0
    %679 = vmatpush2.bf16.msra.mxu0 0
    %680 = vmatprep.subr.bf16.mxu0 0
    %681 = vmatpush2.bf16.msra.mxu0 0
    %682 = vmatprep.subr.bf16.mxu0 0
    %683 = vmatpush2.bf16.msra.mxu0 0
    %684 = vmatprep.subr.bf16.mxu0 0
    %685 = vmatpush2.bf16.msra.mxu0 0
    %686 = vmatprep.subr.bf16.mxu0 0
    %687 = vmatpush2.bf16.msra.mxu0 0
    %688 = vmatprep.subr.bf16.mxu0 0
    %689 = vmatpush2.bf16.msra.mxu0 0
    %690 = vmatprep.subr.bf16.mxu0 0
    %691 = vmatpush2.bf16.msra.mxu0 0
    %692 = vmatprep.subr.bf16.mxu0 0
    %693 = vmatpush2.bf16.msra.mxu0 0
    %694 = vmatprep.mubr.bf16.mxu0 0
    %695 = vmatmul.mubr.bf16.gmra.mxu0 0
    %v696 = vpop.f32.mrf.mxu0
    %v697 = vadd.f32 0.0, %v696
    %v698 = vpop.f32.mrf.mxu0
    %v699 = vadd.f32 0.0, %v698
    %v700 = vpop.f32.mrf.mxu0
    %v701 = vpop.f32.mrf.mxu0
    %702 = vdwg.mxu0
    %v707 = vcombine.low %v656, %v658
    %v708 = vcombine.low %v697, %v699
    %v710 = vunpack.c.l.s4 1966171168
    %v711 = vunpack.c.0.s8 %v710
    %v712 = vlaneseq
    %v713 = vshrl.u32 %v712, 7
    %v714 = vsub.s32 %v711, %v713
    %v715 = vrot.slane %v707, %v714
    %v717 = vunpack.c.l.s4 1966171168
    %v718 = vunpack.c.0.s8 %v717
    %v719 = vlaneseq
    %v720 = vshrl.u32 %v719, 7
    %v721 = vsub.s32 %v718, %v720
    %v722 = vrot.slane %v708, %v721
    %v723 = vcombine.low %v715, %v722
    %v725 = vunpack.c.l.s4 1966171168
    %v726 = vunpack.c.0.s8 %v725
    %v727 = vlaneseq
    %v728 = vshrl.u32 %v727, 7
    %v729 = vsub.s32 %v726, %v728
    %v730 = vrot.slane %v723, %v729
    %v732 = vadd.f32 %v460, %v730
    %v733 = vxor.u32 %v732, 2147483648
    %v734 = vmul.f32 %v733, 1.442695
    %v735 = vpow.pop %v734
    %v736 = vadd.f32 %v735, 1.0
    %v737 = vrcp.pop %v736
    %v738 = vmul.f32 1.0, %v737
    %v740 = vrot.slane %v732, 3
    %v742 = vtanh.pop %v740
    %v744 = vrot.slane %v738, 1
    %v746 = vmul.f32 %v744, 0.0
    %v747 = vmul.f32 %v738, %v742
    %v748 = vadd.f32 %v746, %v747
    %v749 = vtanh.pop %v748
    %v750 = vrot.slane %v738, 2
    %v752 = vmul.f32 %v750, %v749
    %753 = vst [vmem:[#allocation4] sm:$0x1] %v752
    %s754 = scalar_lea.vmem [#allocation3], 1
    %v755 = vld [vmem:[%s754] ss:$8 sm:$0xf]
    %v756 = vpack.c.bf16 %v752, %v752
    %757 = vmatprep.subr.bf16.mxu0 %v586
    %758 = vmatpush1.bf16.msra.mxu0 %v585
    %759 = vmatprep.subr.bf16.mxu0 %v582
    %760 = vmatpush1.bf16.msra.mxu0 %v581
    %761 = vmatprep.subr.bf16.mxu0 %v578
    %762 = vmatpush1.bf16.msra.mxu0 %v577
    %763 = vmatprep.subr.bf16.mxu0 %v574
    %764 = vmatpush1.bf16.msra.mxu0 %v573
    %765 = vmatprep.subr.bf16.mxu0 %v570
    %766 = vmatpush1.bf16.msra.mxu0 %v569
    %767 = vmatprep.subr.bf16.mxu0 %v566
    %768 = vmatpush1.bf16.msra.mxu0 %v565
    %769 = vmatprep.subr.bf16.mxu0 %v562
    %770 = vmatpush1.bf16.msra.mxu0 %v561
    %771 = vmatprep.subr.bf16.mxu0 %v558
    %772 = vmatpush1.bf16.msra.mxu0 %v557
    %773 = vmatprep.subr.bf16.mxu0 0
    %774 = vmatpush2.bf16.msra.mxu0 0
    %775 = vmatprep.subr.bf16.mxu0 0
    %776 = vmatpush2.bf16.msra.mxu0 0
    %777 = vmatprep.subr.bf16.mxu0 0
    %778 = vmatpush2.bf16.msra.mxu0 0
    %779 = vmatprep.subr.bf16.mxu0 0
    %780 = vmatpush2.bf16.msra.mxu0 0
    %781 = vmatprep.subr.bf16.mxu0 0
    %782 = vmatpush2.bf16.msra.mxu0 0
    %783 = vmatprep.subr.bf16.mxu0 0
    %784 = vmatpush2.bf16.msra.mxu0 0
    %785 = vmatprep.subr.bf16.mxu0 0
    %786 = vmatpush2.bf16.msra.mxu0 0
    %787 = vmatprep.subr.bf16.mxu0 0
    %788 = vmatpush2.bf16.msra.mxu0 0
    %789 = vmatprep.mubr.bf16.mxu0 0
    %790 = vmatmul.mubr.bf16.gmra.mxu0 %v756
    %v791 = vpop.f32.mrf.mxu0
    %v792 = vadd.f32 0.0, %v791
    %v793 = vpop.f32.mrf.mxu0
    %v794 = vadd.f32 0.0, %v793
    %v795 = vpop.f32.mrf.mxu0
    %v796 = vpop.f32.mrf.mxu0
    %797 = vdwg.mxu0
    %798 = vmatprep.subr.bf16.mxu0 %v588
    %799 = vmatpush1.bf16.msra.mxu0 %v587
    %800 = vmatprep.subr.bf16.mxu0 %v584
    %801 = vmatpush1.bf16.msra.mxu0 %v583
    %802 = vmatprep.subr.bf16.mxu0 %v580
    %803 = vmatpush1.bf16.msra.mxu0 %v579
    %804 = vmatprep.subr.bf16.mxu0 %v576
    %805 = vmatpush1.bf16.msra.mxu0 %v575
    %806 = vmatprep.subr.bf16.mxu0 %v572
    %807 = vmatpush1.bf16.msra.mxu0 %v571
    %808 = vmatprep.subr.bf16.mxu0 %v568
    %809 = vmatpush1.bf16.msra.mxu0 %v567
    %810 = vmatprep.subr.bf16.mxu0 %v564
    %811 = vmatpush1.bf16.msra.mxu0 %v563
    %812 = vmatprep.subr.bf16.mxu0 %v560
    %813 = vmatpush1.bf16.msra.mxu0 %v559
    %814 = vmatprep.subr.bf16.mxu0 0
    %815 = vmatpush2.bf16.msra.mxu0 0
    %816 = vmatprep.subr.bf16.mxu0 0
    %817 = vmatpush2.bf16.msra.mxu0 0
    %818 = vmatprep.subr.bf16.mxu0 0
    %819 = vmatpush2.bf16.msra.mxu0 0
    %820 = vmatprep.subr.bf16.mxu0 0
    %821 = vmatpush2.bf16.msra.mxu0 0
    %822 = vmatprep.subr.bf16.mxu0 0
    %823 = vmatpush2.bf16.msra.mxu0 0
    %824 = vmatprep.subr.bf16.mxu0 0
    %825 = vmatpush2.bf16.msra.mxu0 0
    %826 = vmatprep.subr.bf16.mxu0 0
    %827 = vmatpush2.bf16.msra.mxu0 0
    %828 = vmatprep.subr.bf16.mxu0 0
    %829 = vmatpush2.bf16.msra.mxu0 0
    %830 = vmatprep.mubr.bf16.mxu0 0
    %831 = vmatmul.mubr.bf16.gmra.mxu0 %v756
    %v832 = vpop.f32.mrf.mxu0
    %v833 = vadd.f32 0.0, %v832
    %v834 = vpop.f32.mrf.mxu0
    %v835 = vadd.f32 0.0, %v834
    %v836 = vpop.f32.mrf.mxu0
    %v837 = vpop.f32.mrf.mxu0
    %838 = vdwg.mxu0
    %v843 = vcombine.low %v792, %v794
    %v844 = vcombine.low %v833, %v835
    %v846 = vunpack.c.l.s4 1966171168
    %v847 = vunpack.c.0.s8 %v846
    %v848 = vlaneseq
    %v849 = vshrl.u32 %v848, 7
    %v850 = vsub.s32 %v847, %v849
    %v851 = vrot.slane %v843, %v850
    %v853 = vunpack.c.l.s4 1966171168
    %v854 = vunpack.c.0.s8 %v853
    %v855 = vlaneseq
    %v856 = vshrl.u32 %v855, 7
    %v857 = vsub.s32 %v854, %v856
    %v858 = vrot.slane %v844, %v857
    %v859 = vcombine.low %v851, %v858
    %v861 = vunpack.c.l.s4 1966171168
    %v862 = vunpack.c.0.s8 %v861
    %v863 = vlaneseq
    %v864 = vshrl.u32 %v863, 7
    %v865 = vsub.s32 %v862, %v864
    %v866 = vrot.slane %v859, %v865
    %v868 = vadd.f32 %v755, %v866
    %v869 = vxor.u32 %v868, 2147483648
    %v870 = vmul.f32 %v869, 1.442695
    %v871 = vpow.pop %v870
    %v872 = vadd.f32 %v871, 1.0
    %v873 = vrcp.pop %v872
    %v874 = vmul.f32 1.0, %v873
    %v876 = vrot.slane %v868, 3
    %v878 = vtanh.pop %v876
    %v880 = vrot.slane %v874, 1
    %v882 = vmul.f32 %v880, %v748
    %v883 = vmul.f32 %v874, %v878
    %v884 = vadd.f32 %v882, %v883
    %v885 = vtanh.pop %v884
    %v886 = vrot.slane %v874, 2
    %v888 = vmul.f32 %v886, %v885
    %889 = vst [vmem:[#allocation4 + $0x1] sm:$0x1] %v888
    %s890 = scalar_lea.vmem [#allocation3], 2
    %v891 = vld [vmem:[%s890] ss:$8 sm:$0xf]
    %v892 = vpack.c.bf16 %v888, %v888
    %893 = vmatprep.subr.bf16.mxu0 %v586
    %894 = vmatpush1.bf16.msra.mxu0 %v585
    %895 = vmatprep.subr.bf16.mxu0 %v582
    %896 = vmatpush1.bf16.msra.mxu0 %v581
    %897 = vmatprep.subr.bf16.mxu0 %v578
    %898 = vmatpush1.bf16.msra.mxu0 %v577
    %899 = vmatprep.subr.bf16.mxu0 %v574
    %900 = vmatpush1.bf16.msra.mxu0 %v573
    %901 = vmatprep.subr.bf16.mxu0 %v570
    %902 = vmatpush1.bf16.msra.mxu0 %v569
    %903 = vmatprep.subr.bf16.mxu0 %v566
    %904 = vmatpush1.bf16.msra.mxu0 %v565
    %905 = vmatprep.subr.bf16.mxu0 %v562
    %906 = vmatpush1.bf16.msra.mxu0 %v561
    %907 = vmatprep.subr.bf16.mxu0 %v558
    %908 = vmatpush1.bf16.msra.mxu0 %v557
    %909 = vmatprep.subr.bf16.mxu0 0
    %910 = vmatpush2.bf16.msra.mxu0 0
    %911 = vmatprep.subr.bf16.mxu0 0
    %912 = vmatpush2.bf16.msra.mxu0 0
    %913 = vmatprep.subr.bf16.mxu0 0
    %914 = vmatpush2.bf16.msra.mxu0 0
    %915 = vmatprep.subr.bf16.mxu0 0
    %916 = vmatpush2.bf16.msra.mxu0 0
    %917 = vmatprep.subr.bf16.mxu0 0
    %918 = vmatpush2.bf16.msra.mxu0 0
    %919 = vmatprep.subr.bf16.mxu0 0
    %920 = vmatpush2.bf16.msra.mxu0 0
    %921 = vmatprep.subr.bf16.mxu0 0
    %922 = vmatpush2.bf16.msra.mxu0 0
    %923 = vmatprep.subr.bf16.mxu0 0
    %924 = vmatpush2.bf16.msra.mxu0 0
    %925 = vmatprep.mubr.bf16.mxu0 0
    %926 = vmatmul.mubr.bf16.gmra.mxu0 %v892
    %v927 = vpop.f32.mrf.mxu0
    %v928 = vadd.f32 0.0, %v927
    %v929 = vpop.f32.mrf.mxu0
    %v930 = vadd.f32 0.0, %v929
    %v931 = vpop.f32.mrf.mxu0
    %v932 = vpop.f32.mrf.mxu0
    %933 = vdwg.mxu0
    %934 = vmatprep.subr.bf16.mxu0 %v588
    %935 = vmatpush1.bf16.msra.mxu0 %v587
    %936 = vmatprep.subr.bf16.mxu0 %v584
    %937 = vmatpush1.bf16.msra.mxu0 %v583
    %938 = vmatprep.subr.bf16.mxu0 %v580
    %939 = vmatpush1.bf16.msra.mxu0 %v579
    %940 = vmatprep.subr.bf16.mxu0 %v576
    %941 = vmatpush1.bf16.msra.mxu0 %v575
    %942 = vmatprep.subr.bf16.mxu0 %v572
    %943 = vmatpush1.bf16.msra.mxu0 %v571
    %944 = vmatprep.subr.bf16.mxu0 %v568
    %945 = vmatpush1.bf16.msra.mxu0 %v567
    %946 = vmatprep.subr.bf16.mxu0 %v564
    %947 = vmatpush1.bf16.msra.mxu0 %v563
    %948 = vmatprep.subr.bf16.mxu0 %v560
    %949 = vmatpush1.bf16.msra.mxu0 %v559
    %950 = vmatprep.subr.bf16.mxu0 0
    %951 = vmatpush2.bf16.msra.mxu0 0
    %952 = vmatprep.subr.bf16.mxu0 0
    %953 = vmatpush2.bf16.msra.mxu0 0
    %954 = vmatprep.subr.bf16.mxu0 0
    %955 = vmatpush2.bf16.msra.mxu0 0
    %956 = vmatprep.subr.bf16.mxu0 0
    %957 = vmatpush2.bf16.msra.mxu0 0
    %958 = vmatprep.subr.bf16.mxu0 0
    %959 = vmatpush2.bf16.msra.mxu0 0
    %960 = vmatprep.subr.bf16.mxu0 0
    %961 = vmatpush2.bf16.msra.mxu0 0
    %962 = vmatprep.subr.bf16.mxu0 0
    %963 = vmatpush2.bf16.msra.mxu0 0
    %964 = vmatprep.subr.bf16.mxu0 0
    %965 = vmatpush2.bf16.msra.mxu0 0
    %966 = vmatprep.mubr.bf16.mxu0 0
    %967 = vmatmul.mubr.bf16.gmra.mxu0 %v892
    %v968 = vpop.f32.mrf.mxu0
    %v969 = vadd.f32 0.0, %v968
    %v970 = vpop.f32.mrf.mxu0
    %v971 = vadd.f32 0.0, %v970
    %v972 = vpop.f32.mrf.mxu0
    %v973 = vpop.f32.mrf.mxu0
    %974 = vdwg.mxu0
    %v979 = vcombine.low %v928, %v930
    %v980 = vcombine.low %v969, %v971
    %v982 = vunpack.c.l.s4 1966171168
    %v983 = vunpack.c.0.s8 %v982
    %v984 = vlaneseq
    %v985 = vshrl.u32 %v984, 7
    %v986 = vsub.s32 %v983, %v985
    %v987 = vrot.slane %v979, %v986
    %v989 = vunpack.c.l.s4 1966171168
    %v990 = vunpack.c.0.s8 %v989
    %v991 = vlaneseq
    %v992 = vshrl.u32 %v991, 7
    %v993 = vsub.s32 %v990, %v992
    %v994 = vrot.slane %v980, %v993
    %v995 = vcombine.low %v987, %v994
    %v997 = vunpack.c.l.s4 1966171168
    %v998 = vunpack.c.0.s8 %v997
    %v999 = vlaneseq
    %v1000 = vshrl.u32 %v999, 7
    %v1001 = vsub.s32 %v998, %v1000
    %v1002 = vrot.slane %v995, %v1001
    %v1004 = vadd.f32 %v891, %v1002
    %v1005 = vxor.u32 %v1004, 2147483648
    %v1006 = vmul.f32 %v1005, 1.442695
    %v1007 = vpow.pop %v1006
    %v1008 = vadd.f32 %v1007, 1.0
    %v1009 = vrcp.pop %v1008
    %v1010 = vmul.f32 1.0, %v1009
    %v1012 = vrot.slane %v1004, 3
    %v1014 = vtanh.pop %v1012
    %v1016 = vrot.slane %v1010, 1
    %v1018 = vmul.f32 %v1016, %v884
    %v1019 = vmul.f32 %v1010, %v1014
    %v1020 = vadd.f32 %v1018, %v1019
    %v1021 = vtanh.pop %v1020
    %v1022 = vrot.slane %v1010, 2
    %v1024 = vmul.f32 %v1022, %v1021
    %1025 = vst [vmem:[#allocation4 + $0x2] sm:$0x1] %v1024
    %s1026 = scalar_lea.vmem [#allocation3], 3
    %v1027 = vld [vmem:[%s1026] ss:$8 sm:$0xf]
    %v1028 = vpack.c.bf16 %v1024, %v1024
    %1029 = vmatprep.subr.bf16.mxu0 %v586
    %1030 = vmatpush1.bf16.msra.mxu0 %v585
    %1031 = vmatprep.subr.bf16.mxu0 %v582
    %1032 = vmatpush1.bf16.msra.mxu0 %v581
    %1033 = vmatprep.subr.bf16.mxu0 %v578
    %1034 = vmatpush1.bf16.msra.mxu0 %v577
    %1035 = vmatprep.subr.bf16.mxu0 %v574
    %1036 = vmatpush1.bf16.msra.mxu0 %v573
    %1037 = vmatprep.subr.bf16.mxu0 %v570
    %1038 = vmatpush1.bf16.msra.mxu0 %v569
    %1039 = vmatprep.subr.bf16.mxu0 %v566
    %1040 = vmatpush1.bf16.msra.mxu0 %v565
    %1041 = vmatprep.subr.bf16.mxu0 %v562
    %1042 = vmatpush1.bf16.msra.mxu0 %v561
    %1043 = vmatprep.subr.bf16.mxu0 %v558
    %1044 = vmatpush1.bf16.msra.mxu0 %v557
    %1045 = vmatprep.subr.bf16.mxu0 0
    %1046 = vmatpush2.bf16.msra.mxu0 0
    %1047 = vmatprep.subr.bf16.mxu0 0
    %1048 = vmatpush2.bf16.msra.mxu0 0
    %1049 = vmatprep.subr.bf16.mxu0 0
    %1050 = vmatpush2.bf16.msra.mxu0 0
    %1051 = vmatprep.subr.bf16.mxu0 0
    %1052 = vmatpush2.bf16.msra.mxu0 0
    %1053 = vmatprep.subr.bf16.mxu0 0
    %1054 = vmatpush2.bf16.msra.mxu0 0
    %1055 = vmatprep.subr.bf16.mxu0 0
    %1056 = vmatpush2.bf16.msra.mxu0 0
    %1057 = vmatprep.subr.bf16.mxu0 0
    %1058 = vmatpush2.bf16.msra.mxu0 0
    %1059 = vmatprep.subr.bf16.mxu0 0
    %1060 = vmatpush2.bf16.msra.mxu0 0
    %1061 = vmatprep.mubr.bf16.mxu0 0
    %1062 = vmatmul.mubr.bf16.gmra.mxu0 %v1028
    %v1063 = vpop.f32.mrf.mxu0
    %v1064 = vadd.f32 0.0, %v1063
    %v1065 = vpop.f32.mrf.mxu0
    %v1066 = vadd.f32 0.0, %v1065
    %v1067 = vpop.f32.mrf.mxu0
    %v1068 = vpop.f32.mrf.mxu0
    %1069 = vdwg.mxu0
    %1070 = vmatprep.subr.bf16.mxu0 %v588
    %1071 = vmatpush1.bf16.msra.mxu0 %v587
    %1072 = vmatprep.subr.bf16.mxu0 %v584
    %1073 = vmatpush1.bf16.msra.mxu0 %v583
    %1074 = vmatprep.subr.bf16.mxu0 %v580
    %1075 = vmatpush1.bf16.msra.mxu0 %v579
    %1076 = vmatprep.subr.bf16.mxu0 %v576
    %1077 = vmatpush1.bf16.msra.mxu0 %v575
    %1078 = vmatprep.subr.bf16.mxu0 %v572
    %1079 = vmatpush1.bf16.msra.mxu0 %v571
    %1080 = vmatprep.subr.bf16.mxu0 %v568
    %1081 = vmatpush1.bf16.msra.mxu0 %v567
    %1082 = vmatprep.subr.bf16.mxu0 %v564
    %1083 = vmatpush1.bf16.msra.mxu0 %v563
    %1084 = vmatprep.subr.bf16.mxu0 %v560
    %1085 = vmatpush1.bf16.msra.mxu0 %v559
    %1086 = vmatprep.subr.bf16.mxu0 0
    %1087 = vmatpush2.bf16.msra.mxu0 0
    %1088 = vmatprep.subr.bf16.mxu0 0
    %1089 = vmatpush2.bf16.msra.mxu0 0
    %1090 = vmatprep.subr.bf16.mxu0 0
    %1091 = vmatpush2.bf16.msra.mxu0 0
    %1092 = vmatprep.subr.bf16.mxu0 0
    %1093 = vmatpush2.bf16.msra.mxu0 0
    %1094 = vmatprep.subr.bf16.mxu0 0
    %1095 = vmatpush2.bf16.msra.mxu0 0
    %1096 = vmatprep.subr.bf16.mxu0 0
    %1097 = vmatpush2.bf16.msra.mxu0 0
    %1098 = vmatprep.subr.bf16.mxu0 0
    %1099 = vmatpush2.bf16.msra.mxu0 0
    %1100 = vmatprep.subr.bf16.mxu0 0
    %1101 = vmatpush2.bf16.msra.mxu0 0
    %1102 = vmatprep.mubr.bf16.mxu0 0
    %1103 = vmatmul.mubr.bf16.gmra.mxu0 %v1028
    %v1104 = vpop.f32.mrf.mxu0
    %v1105 = vadd.f32 0.0, %v1104
    %v1106 = vpop.f32.mrf.mxu0
    %v1107 = vadd.f32 0.0, %v1106
    %v1108 = vpop.f32.mrf.mxu0
    %v1109 = vpop.f32.mrf.mxu0
    %1110 = vdwg.mxu0
    %v1115 = vcombine.low %v1064, %v1066
    %v1116 = vcombine.low %v1105, %v1107
    %v1118 = vunpack.c.l.s4 1966171168
    %v1119 = vunpack.c.0.s8 %v1118
    %v1120 = vlaneseq
    %v1121 = vshrl.u32 %v1120, 7
    %v1122 = vsub.s32 %v1119, %v1121
    %v1123 = vrot.slane %v1115, %v1122
    %v1125 = vunpack.c.l.s4 1966171168
    %v1126 = vunpack.c.0.s8 %v1125
    %v1127 = vlaneseq
    %v1128 = vshrl.u32 %v1127, 7
    %v1129 = vsub.s32 %v1126, %v1128
    %v1130 = vrot.slane %v1116, %v1129
    %v1131 = vcombine.low %v1123, %v1130
    %v1133 = vunpack.c.l.s4 1966171168
    %v1134 = vunpack.c.0.s8 %v1133
    %v1135 = vlaneseq
    %v1136 = vshrl.u32 %v1135, 7
    %v1137 = vsub.s32 %v1134, %v1136
    %v1138 = vrot.slane %v1131, %v1137
    %v1140 = vadd.f32 %v1027, %v1138
    %v1141 = vxor.u32 %v1140, 2147483648
    %v1142 = vmul.f32 %v1141, 1.442695
    %v1143 = vpow.pop %v1142
    %v1144 = vadd.f32 %v1143, 1.0
    %v1145 = vrcp.pop %v1144
    %v1146 = vmul.f32 1.0, %v1145
    %v1148 = vrot.slane %v1140, 3
    %v1150 = vtanh.pop %v1148
    %v1152 = vrot.slane %v1146, 1
    %v1154 = vmul.f32 %v1152, %v1020
    %v1155 = vmul.f32 %v1146, %v1150
    %v1156 = vadd.f32 %v1154, %v1155
    %v1157 = vtanh.pop %v1156
    %v1158 = vrot.slane %v1146, 2
    %v1160 = vmul.f32 %v1158, %v1157
    %1161 = vst [vmem:[#allocation4 + $0x3] sm:$0x1] %v1160
    %s1162 = scalar_lea.vmem [#allocation3], 4
    %v1163 = vld [vmem:[%s1162] ss:$8 sm:$0xf]
    %v1164 = vpack.c.bf16 %v1160, %v1160
    %1165 = vmatprep.subr.bf16.mxu0 %v586
    %1166 = vmatpush1.bf16.msra.mxu0 %v585
    %1167 = vmatprep.subr.bf16.mxu0 %v582
    %1168 = vmatpush1.bf16.msra.mxu0 %v581
    %1169 = vmatprep.subr.bf16.mxu0 %v578
    %1170 = vmatpush1.bf16.msra.mxu0 %v577
    %1171 = vmatprep.subr.bf16.mxu0 %v574
    %1172 = vmatpush1.bf16.msra.mxu0 %v573
    %1173 = vmatprep.subr.bf16.mxu0 %v570
    %1174 = vmatpush1.bf16.msra.mxu0 %v569
    %1175 = vmatprep.subr.bf16.mxu0 %v566
    %1176 = vmatpush1.bf16.msra.mxu0 %v565
    %1177 = vmatprep.subr.bf16.mxu0 %v562
    %1178 = vmatpush1.bf16.msra.mxu0 %v561
    %1179 = vmatprep.subr.bf16.mxu0 %v558
    %1180 = vmatpush1.bf16.msra.mxu0 %v557
    %1181 = vmatprep.subr.bf16.mxu0 0
    %1182 = vmatpush2.bf16.msra.mxu0 0
    %1183 = vmatprep.subr.bf16.mxu0 0
    %1184 = vmatpush2.bf16.msra.mxu0 0
    %1185 = vmatprep.subr.bf16.mxu0 0
    %1186 = vmatpush2.bf16.msra.mxu0 0
    %1187 = vmatprep.subr.bf16.mxu0 0
    %1188 = vmatpush2.bf16.msra.mxu0 0
    %1189 = vmatprep.subr.bf16.mxu0 0
    %1190 = vmatpush2.bf16.msra.mxu0 0
    %1191 = vmatprep.subr.bf16.mxu0 0
    %1192 = vmatpush2.bf16.msra.mxu0 0
    %1193 = vmatprep.subr.bf16.mxu0 0
    %1194 = vmatpush2.bf16.msra.mxu0 0
    %1195 = vmatprep.subr.bf16.mxu0 0
    %1196 = vmatpush2.bf16.msra.mxu0 0
    %1197 = vmatprep.mubr.bf16.mxu0 0
    %1198 = vmatmul.mubr.bf16.gmra.mxu0 %v1164
    %v1199 = vpop.f32.mrf.mxu0
    %v1200 = vadd.f32 0.0, %v1199
    %v1201 = vpop.f32.mrf.mxu0
    %v1202 = vadd.f32 0.0, %v1201
    %v1203 = vpop.f32.mrf.mxu0
    %v1204 = vpop.f32.mrf.mxu0
    %1205 = vdwg.mxu0
    %1206 = vmatprep.subr.bf16.mxu0 %v588
    %1207 = vmatpush1.bf16.msra.mxu0 %v587
    %1208 = vmatprep.subr.bf16.mxu0 %v584
    %1209 = vmatpush1.bf16.msra.mxu0 %v583
    %1210 = vmatprep.subr.bf16.mxu0 %v580
    %1211 = vmatpush1.bf16.msra.mxu0 %v579
    %1212 = vmatprep.subr.bf16.mxu0 %v576
    %1213 = vmatpush1.bf16.msra.mxu0 %v575
    %1214 = vmatprep.subr.bf16.mxu0 %v572
    %1215 = vmatpush1.bf16.msra.mxu0 %v571
    %1216 = vmatprep.subr.bf16.mxu0 %v568
    %1217 = vmatpush1.bf16.msra.mxu0 %v567
    %1218 = vmatprep.subr.bf16.mxu0 %v564
    %1219 = vmatpush1.bf16.msra.mxu0 %v563
    %1220 = vmatprep.subr.bf16.mxu0 %v560
    %1221 = vmatpush1.bf16.msra.mxu0 %v559
    %1222 = vmatprep.subr.bf16.mxu0 0
    %1223 = vmatpush2.bf16.msra.mxu0 0
    %1224 = vmatprep.subr.bf16.mxu0 0
    %1225 = vmatpush2.bf16.msra.mxu0 0
    %1226 = vmatprep.subr.bf16.mxu0 0
    %1227 = vmatpush2.bf16.msra.mxu0 0
    %1228 = vmatprep.subr.bf16.mxu0 0
    %1229 = vmatpush2.bf16.msra.mxu0 0
    %1230 = vmatprep.subr.bf16.mxu0 0
    %1231 = vmatpush2.bf16.msra.mxu0 0
    %1232 = vmatprep.subr.bf16.mxu0 0
    %1233 = vmatpush2.bf16.msra.mxu0 0
    %1234 = vmatprep.subr.bf16.mxu0 0
    %1235 = vmatpush2.bf16.msra.mxu0 0
    %1236 = vmatprep.subr.bf16.mxu0 0
    %1237 = vmatpush2.bf16.msra.mxu0 0
    %1238 = vmatprep.mubr.bf16.mxu0 0
    %1239 = vmatmul.mubr.bf16.gmra.mxu0 %v1164
    %v1240 = vpop.f32.mrf.mxu0
    %v1241 = vadd.f32 0.0, %v1240
    %v1242 = vpop.f32.mrf.mxu0
    %v1243 = vadd.f32 0.0, %v1242
    %v1244 = vpop.f32.mrf.mxu0
    %v1245 = vpop.f32.mrf.mxu0
    %1246 = vdwg.mxu0
    %v1251 = vcombine.low %v1200, %v1202
    %v1252 = vcombine.low %v1241, %v1243
    %v1254 = vunpack.c.l.s4 1966171168
    %v1255 = vunpack.c.0.s8 %v1254
    %v1256 = vlaneseq
    %v1257 = vshrl.u32 %v1256, 7
    %v1258 = vsub.s32 %v1255, %v1257
    %v1259 = vrot.slane %v1251, %v1258
    %v1261 = vunpack.c.l.s4 1966171168
    %v1262 = vunpack.c.0.s8 %v1261
    %v1263 = vlaneseq
    %v1264 = vshrl.u32 %v1263, 7
    %v1265 = vsub.s32 %v1262, %v1264
    %v1266 = vrot.slane %v1252, %v1265
    %v1267 = vcombine.low %v1259, %v1266
    %v1269 = vunpack.c.l.s4 1966171168
    %v1270 = vunpack.c.0.s8 %v1269
    %v1271 = vlaneseq
    %v1272 = vshrl.u32 %v1271, 7
    %v1273 = vsub.s32 %v1270, %v1272
    %v1274 = vrot.slane %v1267, %v1273
    %v1276 = vadd.f32 %v1163, %v1274
    %v1277 = vxor.u32 %v1276, 2147483648
    %v1278 = vmul.f32 %v1277, 1.442695
    %v1279 = vpow.pop %v1278
    %v1280 = vadd.f32 %v1279, 1.0
    %v1281 = vrcp.pop %v1280
    %v1282 = vmul.f32 1.0, %v1281
    %v1284 = vrot.slane %v1276, 3
    %v1286 = vtanh.pop %v1284
    %v1288 = vrot.slane %v1282, 1
    %v1290 = vmul.f32 %v1288, %v1156
    %v1291 = vmul.f32 %v1282, %v1286
    %v1292 = vadd.f32 %v1290, %v1291
    %v1293 = vtanh.pop %v1292
    %v1294 = vrot.slane %v1282, 2
    %v1296 = vmul.f32 %v1294, %v1293
    %1297 = vst [vmem:[#allocation4 + $0x4] sm:$0x1] %v1296
    %s1298 = scalar_lea.vmem [#allocation3], 5
    %v1299 = vld [vmem:[%s1298] ss:$8 sm:$0xf]
    %v1300 = vpack.c.bf16 %v1296, %v1296
    %1301 = vmatprep.subr.bf16.mxu0 %v586
    %1302 = vmatpush1.bf16.msra.mxu0 %v585
    %1303 = vmatprep.subr.bf16.mxu0 %v582
    %1304 = vmatpush1.bf16.msra.mxu0 %v581
    %1305 = vmatprep.subr.bf16.mxu0 %v578
    %1306 = vmatpush1.bf16.msra.mxu0 %v577
    %1307 = vmatprep.subr.bf16.mxu0 %v574
    %1308 = vmatpush1.bf16.msra.mxu0 %v573
    %1309 = vmatprep.subr.bf16.mxu0 %v570
    %1310 = vmatpush1.bf16.msra.mxu0 %v569
    %1311 = vmatprep.subr.bf16.mxu0 %v566
    %1312 = vmatpush1.bf16.msra.mxu0 %v565
    %1313 = vmatprep.subr.bf16.mxu0 %v562
    %1314 = vmatpush1.bf16.msra.mxu0 %v561
    %1315 = vmatprep.subr.bf16.mxu0 %v558
    %1316 = vmatpush1.bf16.msra.mxu0 %v557
    %1317 = vmatprep.subr.bf16.mxu0 0
    %1318 = vmatpush2.bf16.msra.mxu0 0
    %1319 = vmatprep.subr.bf16.mxu0 0
    %1320 = vmatpush2.bf16.msra.mxu0 0
    %1321 = vmatprep.subr.bf16.mxu0 0
    %1322 = vmatpush2.bf16.msra.mxu0 0
    %1323 = vmatprep.subr.bf16.mxu0 0
    %1324 = vmatpush2.bf16.msra.mxu0 0
    %1325 = vmatprep.subr.bf16.mxu0 0
    %1326 = vmatpush2.bf16.msra.mxu0 0
    %1327 = vmatprep.subr.bf16.mxu0 0
    %1328 = vmatpush2.bf16.msra.mxu0 0
    %1329 = vmatprep.subr.bf16.mxu0 0
    %1330 = vmatpush2.bf16.msra.mxu0 0
    %1331 = vmatprep.subr.bf16.mxu0 0
    %1332 = vmatpush2.bf16.msra.mxu0 0
    %1333 = vmatprep.mubr.bf16.mxu0 0
    %1334 = vmatmul.mubr.bf16.gmra.mxu0 %v1300
    %v1335 = vpop.f32.mrf.mxu0
    %v1336 = vadd.f32 0.0, %v1335
    %v1337 = vpop.f32.mrf.mxu0
    %v1338 = vadd.f32 0.0, %v1337
    %v1339 = vpop.f32.mrf.mxu0
    %v1340 = vpop.f32.mrf.mxu0
    %1341 = vdwg.mxu0
    %1342 = vmatprep.subr.bf16.mxu0 %v588
    %1343 = vmatpush1.bf16.msra.mxu0 %v587
    %1344 = vmatprep.subr.bf16.mxu0 %v584
    %1345 = vmatpush1.bf16.msra.mxu0 %v583
    %1346 = vmatprep.subr.bf16.mxu0 %v580
    %1347 = vmatpush1.bf16.msra.mxu0 %v579
    %1348 = vmatprep.subr.bf16.mxu0 %v576
    %1349 = vmatpush1.bf16.msra.mxu0 %v575
    %1350 = vmatprep.subr.bf16.mxu0 %v572
    %1351 = vmatpush1.bf16.msra.mxu0 %v571
    %1352 = vmatprep.subr.bf16.mxu0 %v568
    %1353 = vmatpush1.bf16.msra.mxu0 %v567
    %1354 = vmatprep.subr.bf16.mxu0 %v564
    %1355 = vmatpush1.bf16.msra.mxu0 %v563
    %1356 = vmatprep.subr.bf16.mxu0 %v560
    %1357 = vmatpush1.bf16.msra.mxu0 %v559
    %1358 = vmatprep.subr.bf16.mxu0 0
    %1359 = vmatpush2.bf16.msra.mxu0 0
    %1360 = vmatprep.subr.bf16.mxu0 0
    %1361 = vmatpush2.bf16.msra.mxu0 0
    %1362 = vmatprep.subr.bf16.mxu0 0
    %1363 = vmatpush2.bf16.msra.mxu0 0
    %1364 = vmatprep.subr.bf16.mxu0 0
    %1365 = vmatpush2.bf16.msra.mxu0 0
    %1366 = vmatprep.subr.bf16.mxu0 0
    %1367 = vmatpush2.bf16.msra.mxu0 0
    %1368 = vmatprep.subr.bf16.mxu0 0
    %1369 = vmatpush2.bf16.msra.mxu0 0
    %1370 = vmatprep.subr.bf16.mxu0 0
    %1371 = vmatpush2.bf16.msra.mxu0 0
    %1372 = vmatprep.subr.bf16.mxu0 0
    %1373 = vmatpush2.bf16.msra.mxu0 0
    %1374 = vmatprep.mubr.bf16.mxu0 0
    %1375 = vmatmul.mubr.bf16.gmra.mxu0 %v1300
    %v1376 = vpop.f32.mrf.mxu0
    %v1377 = vadd.f32 0.0, %v1376
    %v1378 = vpop.f32.mrf.mxu0
    %v1379 = vadd.f32 0.0, %v1378
    %v1380 = vpop.f32.mrf.mxu0
    %v1381 = vpop.f32.mrf.mxu0
    %1382 = vdwg.mxu0
    %v1387 = vcombine.low %v1336, %v1338
    %v1388 = vcombine.low %v1377, %v1379
    %v1390 = vunpack.c.l.s4 1966171168
    %v1391 = vunpack.c.0.s8 %v1390
    %v1392 = vlaneseq
    %v1393 = vshrl.u32 %v1392, 7
    %v1394 = vsub.s32 %v1391, %v1393
    %v1395 = vrot.slane %v1387, %v1394
    %v1397 = vunpack.c.l.s4 1966171168
    %v1398 = vunpack.c.0.s8 %v1397
    %v1399 = vlaneseq
    %v1400 = vshrl.u32 %v1399, 7
    %v1401 = vsub.s32 %v1398, %v1400
    %v1402 = vrot.slane %v1388, %v1401
    %v1403 = vcombine.low %v1395, %v1402
    %v1405 = vunpack.c.l.s4 1966171168
    %v1406 = vunpack.c.0.s8 %v1405
    %v1407 = vlaneseq
    %v1408 = vshrl.u32 %v1407, 7
    %v1409 = vsub.s32 %v1406, %v1408
    %v1410 = vrot.slane %v1403, %v1409
    %v1412 = vadd.f32 %v1299, %v1410
    %v1413 = vxor.u32 %v1412, 2147483648
    %v1414 = vmul.f32 %v1413, 1.442695
    %v1415 = vpow.pop %v1414
    %v1416 = vadd.f32 %v1415, 1.0
    %v1417 = vrcp.pop %v1416
    %v1418 = vmul.f32 1.0, %v1417
    %v1420 = vrot.slane %v1412, 3
    %v1422 = vtanh.pop %v1420
    %v1424 = vrot.slane %v1418, 1
    %v1426 = vmul.f32 %v1424, %v1292
    %v1427 = vmul.f32 %v1418, %v1422
    %v1428 = vadd.f32 %v1426, %v1427
    %v1429 = vtanh.pop %v1428
    %v1430 = vrot.slane %v1418, 2
    %v1432 = vmul.f32 %v1430, %v1429
    %1433 = vst [vmem:[#allocation4 + $0x5] sm:$0x1] %v1432
    %s1434 = scalar_lea.vmem [#allocation3], 6
    %v1435 = vld [vmem:[%s1434] ss:$8 sm:$0xf]
    %v1436 = vpack.c.bf16 %v1432, %v1432
    %1437 = vmatprep.subr.bf16.mxu0 %v586
    %1438 = vmatpush1.bf16.msra.mxu0 %v585
    %1439 = vmatprep.subr.bf16.mxu0 %v582
    %1440 = vmatpush1.bf16.msra.mxu0 %v581
    %1441 = vmatprep.subr.bf16.mxu0 %v578
    %1442 = vmatpush1.bf16.msra.mxu0 %v577
    %1443 = vmatprep.subr.bf16.mxu0 %v574
    %1444 = vmatpush1.bf16.msra.mxu0 %v573
    %1445 = vmatprep.subr.bf16.mxu0 %v570
    %1446 = vmatpush1.bf16.msra.mxu0 %v569
    %1447 = vmatprep.subr.bf16.mxu0 %v566
    %1448 = vmatpush1.bf16.msra.mxu0 %v565
    %1449 = vmatprep.subr.bf16.mxu0 %v562
    %1450 = vmatpush1.bf16.msra.mxu0 %v561
    %1451 = vmatprep.subr.bf16.mxu0 %v558
    %1452 = vmatpush1.bf16.msra.mxu0 %v557
    %1453 = vmatprep.subr.bf16.mxu0 0
    %1454 = vmatpush2.bf16.msra.mxu0 0
    %1455 = vmatprep.subr.bf16.mxu0 0
    %1456 = vmatpush2.bf16.msra.mxu0 0
    %1457 = vmatprep.subr.bf16.mxu0 0
    %1458 = vmatpush2.bf16.msra.mxu0 0
    %1459 = vmatprep.subr.bf16.mxu0 0
    %1460 = vmatpush2.bf16.msra.mxu0 0
    %1461 = vmatprep.subr.bf16.mxu0 0
    %1462 = vmatpush2.bf16.msra.mxu0 0
    %1463 = vmatprep.subr.bf16.mxu0 0
    %1464 = vmatpush2.bf16.msra.mxu0 0
    %1465 = vmatprep.subr.bf16.mxu0 0
    %1466 = vmatpush2.bf16.msra.mxu0 0
    %1467 = vmatprep.subr.bf16.mxu0 0
    %1468 = vmatpush2.bf16.msra.mxu0 0
    %1469 = vmatprep.mubr.bf16.mxu0 0
    %1470 = vmatmul.mubr.bf16.gmra.mxu0 %v1436
    %v1471 = vpop.f32.mrf.mxu0
    %v1472 = vadd.f32 0.0, %v1471
    %v1473 = vpop.f32.mrf.mxu0
    %v1474 = vadd.f32 0.0, %v1473
    %v1475 = vpop.f32.mrf.mxu0
    %v1476 = vpop.f32.mrf.mxu0
    %1477 = vdwg.mxu0
    %1478 = vmatprep.subr.bf16.mxu0 %v588
    %1479 = vmatpush1.bf16.msra.mxu0 %v587
    %1480 = vmatprep.subr.bf16.mxu0 %v584
    %1481 = vmatpush1.bf16.msra.mxu0 %v583
    %1482 = vmatprep.subr.bf16.mxu0 %v580
    %1483 = vmatpush1.bf16.msra.mxu0 %v579
    %1484 = vmatprep.subr.bf16.mxu0 %v576
    %1485 = vmatpush1.bf16.msra.mxu0 %v575
    %1486 = vmatprep.subr.bf16.mxu0 %v572
    %1487 = vmatpush1.bf16.msra.mxu0 %v571
    %1488 = vmatprep.subr.bf16.mxu0 %v568
    %1489 = vmatpush1.bf16.msra.mxu0 %v567
    %1490 = vmatprep.subr.bf16.mxu0 %v564
    %1491 = vmatpush1.bf16.msra.mxu0 %v563
    %1492 = vmatprep.subr.bf16.mxu0 %v560
    %1493 = vmatpush1.bf16.msra.mxu0 %v559
    %1494 = vmatprep.subr.bf16.mxu0 0
    %1495 = vmatpush2.bf16.msra.mxu0 0
    %1496 = vmatprep.subr.bf16.mxu0 0
    %1497 = vmatpush2.bf16.msra.mxu0 0
    %1498 = vmatprep.subr.bf16.mxu0 0
    %1499 = vmatpush2.bf16.msra.mxu0 0
    %1500 = vmatprep.subr.bf16.mxu0 0
    %1501 = vmatpush2.bf16.msra.mxu0 0
    %1502 = vmatprep.subr.bf16.mxu0 0
    %1503 = vmatpush2.bf16.msra.mxu0 0
    %1504 = vmatprep.subr.bf16.mxu0 0
    %1505 = vmatpush2.bf16.msra.mxu0 0
    %1506 = vmatprep.subr.bf16.mxu0 0
    %1507 = vmatpush2.bf16.msra.mxu0 0
    %1508 = vmatprep.subr.bf16.mxu0 0
    %1509 = vmatpush2.bf16.msra.mxu0 0
    %1510 = vmatprep.mubr.bf16.mxu0 0
    %1511 = vmatmul.mubr.bf16.gmra.mxu0 %v1436
    %v1512 = vpop.f32.mrf.mxu0
    %v1513 = vadd.f32 0.0, %v1512
    %v1514 = vpop.f32.mrf.mxu0
    %v1515 = vadd.f32 0.0, %v1514
    %v1516 = vpop.f32.mrf.mxu0
    %v1517 = vpop.f32.mrf.mxu0
    %1518 = vdwg.mxu0
    %v1523 = vcombine.low %v1472, %v1474
    %v1524 = vcombine.low %v1513, %v1515
    %v1526 = vunpack.c.l.s4 1966171168
    %v1527 = vunpack.c.0.s8 %v1526
    %v1528 = vlaneseq
    %v1529 = vshrl.u32 %v1528, 7
    %v1530 = vsub.s32 %v1527, %v1529
    %v1531 = vrot.slane %v1523, %v1530
    %v1533 = vunpack.c.l.s4 1966171168
    %v1534 = vunpack.c.0.s8 %v1533
    %v1535 = vlaneseq
    %v1536 = vshrl.u32 %v1535, 7
    %v1537 = vsub.s32 %v1534, %v1536
    %v1538 = vrot.slane %v1524, %v1537
    %v1539 = vcombine.low %v1531, %v1538
    %v1541 = vunpack.c.l.s4 1966171168
    %v1542 = vunpack.c.0.s8 %v1541
    %v1543 = vlaneseq
    %v1544 = vshrl.u32 %v1543, 7
    %v1545 = vsub.s32 %v1542, %v1544
    %v1546 = vrot.slane %v1539, %v1545
    %v1548 = vadd.f32 %v1435, %v1546
    %v1549 = vxor.u32 %v1548, 2147483648
    %v1550 = vmul.f32 %v1549, 1.442695
    %v1551 = vpow.pop %v1550
    %v1552 = vadd.f32 %v1551, 1.0
    %v1553 = vrcp.pop %v1552
    %v1554 = vmul.f32 1.0, %v1553
    %v1556 = vrot.slane %v1548, 3
    %v1558 = vtanh.pop %v1556
    %v1560 = vrot.slane %v1554, 1
    %v1562 = vmul.f32 %v1560, %v1428
    %v1563 = vmul.f32 %v1554, %v1558
    %v1564 = vadd.f32 %v1562, %v1563
    %v1565 = vtanh.pop %v1564
    %v1566 = vrot.slane %v1554, 2
    %v1568 = vmul.f32 %v1566, %v1565
    %1569 = vst [vmem:[#allocation4 + $0x6] sm:$0x1] %v1568
    %s1570 = scalar_lea.vmem [#allocation3], 7
    %v1571 = vld [vmem:[%s1570] ss:$8 sm:$0xf]
    %v1572 = vpack.c.bf16 %v1568, %v1568
    %1573 = vmatprep.subr.bf16.mxu0 %v586
    %1574 = vmatpush1.bf16.msra.mxu0 %v585
    %1575 = vmatprep.subr.bf16.mxu0 %v582
    %1576 = vmatpush1.bf16.msra.mxu0 %v581
    %1577 = vmatprep.subr.bf16.mxu0 %v578
    %1578 = vmatpush1.bf16.msra.mxu0 %v577
    %1579 = vmatprep.subr.bf16.mxu0 %v574
    %1580 = vmatpush1.bf16.msra.mxu0 %v573
    %1581 = vmatprep.subr.bf16.mxu0 %v570
    %1582 = vmatpush1.bf16.msra.mxu0 %v569
    %1583 = vmatprep.subr.bf16.mxu0 %v566
    %1584 = vmatpush1.bf16.msra.mxu0 %v565
    %1585 = vmatprep.subr.bf16.mxu0 %v562
    %1586 = vmatpush1.bf16.msra.mxu0 %v561
    %1587 = vmatprep.subr.bf16.mxu0 %v558
    %1588 = vmatpush1.bf16.msra.mxu0 %v557
    %1589 = vmatprep.subr.bf16.mxu0 0
    %1590 = vmatpush2.bf16.msra.mxu0 0
    %1591 = vmatprep.subr.bf16.mxu0 0
    %1592 = vmatpush2.bf16.msra.mxu0 0
    %1593 = vmatprep.subr.bf16.mxu0 0
    %1594 = vmatpush2.bf16.msra.mxu0 0
    %1595 = vmatprep.subr.bf16.mxu0 0
    %1596 = vmatpush2.bf16.msra.mxu0 0
    %1597 = vmatprep.subr.bf16.mxu0 0
    %1598 = vmatpush2.bf16.msra.mxu0 0
    %1599 = vmatprep.subr.bf16.mxu0 0
    %1600 = vmatpush2.bf16.msra.mxu0 0
    %1601 = vmatprep.subr.bf16.mxu0 0
    %1602 = vmatpush2.bf16.msra.mxu0 0
    %1603 = vmatprep.subr.bf16.mxu0 0
    %1604 = vmatpush2.bf16.msra.mxu0 0
    %1605 = vmatprep.mubr.bf16.mxu0 0
    %1606 = vmatmul.mubr.bf16.gmra.mxu0 %v1572
    %v1607 = vpop.f32.mrf.mxu0
    %v1608 = vadd.f32 0.0, %v1607
    %v1609 = vpop.f32.mrf.mxu0
    %v1610 = vadd.f32 0.0, %v1609
    %v1611 = vpop.f32.mrf.mxu0
    %v1612 = vpop.f32.mrf.mxu0
    %1613 = vdwg.mxu0
    %1614 = vmatprep.subr.bf16.mxu0 %v588
    %1615 = vmatpush1.bf16.msra.mxu0 %v587
    %1616 = vmatprep.subr.bf16.mxu0 %v584
    %1617 = vmatpush1.bf16.msra.mxu0 %v583
    %1618 = vmatprep.subr.bf16.mxu0 %v580
    %1619 = vmatpush1.bf16.msra.mxu0 %v579
    %1620 = vmatprep.subr.bf16.mxu0 %v576
    %1621 = vmatpush1.bf16.msra.mxu0 %v575
    %1622 = vmatprep.subr.bf16.mxu0 %v572
    %1623 = vmatpush1.bf16.msra.mxu0 %v571
    %1624 = vmatprep.subr.bf16.mxu0 %v568
    %1625 = vmatpush1.bf16.msra.mxu0 %v567
    %1626 = vmatprep.subr.bf16.mxu0 %v564
    %1627 = vmatpush1.bf16.msra.mxu0 %v563
    %1628 = vmatprep.subr.bf16.mxu0 %v560
    %1629 = vmatpush1.bf16.msra.mxu0 %v559
    %1630 = vmatprep.subr.bf16.mxu0 0
    %1631 = vmatpush2.bf16.msra.mxu0 0
    %1632 = vmatprep.subr.bf16.mxu0 0
    %1633 = vmatpush2.bf16.msra.mxu0 0
    %1634 = vmatprep.subr.bf16.mxu0 0
    %1635 = vmatpush2.bf16.msra.mxu0 0
    %1636 = vmatprep.subr.bf16.mxu0 0
    %1637 = vmatpush2.bf16.msra.mxu0 0
    %1638 = vmatprep.subr.bf16.mxu0 0
    %1639 = vmatpush2.bf16.msra.mxu0 0
    %1640 = vmatprep.subr.bf16.mxu0 0
    %1641 = vmatpush2.bf16.msra.mxu0 0
    %1642 = vmatprep.subr.bf16.mxu0 0
    %1643 = vmatpush2.bf16.msra.mxu0 0
    %1644 = vmatprep.subr.bf16.mxu0 0
    %1645 = vmatpush2.bf16.msra.mxu0 0
    %1646 = vmatprep.mubr.bf16.mxu0 0
    %1647 = vmatmul.mubr.bf16.gmra.mxu0 %v1572
    %v1648 = vpop.f32.mrf.mxu0
    %v1649 = vadd.f32 0.0, %v1648
    %v1650 = vpop.f32.mrf.mxu0
    %v1651 = vadd.f32 0.0, %v1650
    %v1652 = vpop.f32.mrf.mxu0
    %v1653 = vpop.f32.mrf.mxu0
    %1654 = vdwg.mxu0
    %v1659 = vcombine.low %v1608, %v1610
    %v1660 = vcombine.low %v1649, %v1651
    %v1662 = vunpack.c.l.s4 1966171168
    %v1663 = vunpack.c.0.s8 %v1662
    %v1664 = vlaneseq
    %v1665 = vshrl.u32 %v1664, 7
    %v1666 = vsub.s32 %v1663, %v1665
    %v1667 = vrot.slane %v1659, %v1666
    %v1669 = vunpack.c.l.s4 1966171168
    %v1670 = vunpack.c.0.s8 %v1669
    %v1671 = vlaneseq
    %v1672 = vshrl.u32 %v1671, 7
    %v1673 = vsub.s32 %v1670, %v1672
    %v1674 = vrot.slane %v1660, %v1673
    %v1675 = vcombine.low %v1667, %v1674
    %v1677 = vunpack.c.l.s4 1966171168
    %v1678 = vunpack.c.0.s8 %v1677
    %v1679 = vlaneseq
    %v1680 = vshrl.u32 %v1679, 7
    %v1681 = vsub.s32 %v1678, %v1680
    %v1682 = vrot.slane %v1675, %v1681
    %v1684 = vadd.f32 %v1571, %v1682
    %v1685 = vxor.u32 %v1684, 2147483648
    %v1686 = vmul.f32 %v1685, 1.442695
    %v1687 = vpow.pop %v1686
    %v1688 = vadd.f32 %v1687, 1.0
    %v1689 = vrcp.pop %v1688
    %v1690 = vmul.f32 1.0, %v1689
    %v1692 = vrot.slane %v1684, 3
    %v1694 = vtanh.pop %v1692
    %v1696 = vrot.slane %v1690, 1
    %v1698 = vmul.f32 %v1696, %v1564
    %v1699 = vmul.f32 %v1690, %v1694
    %v1700 = vadd.f32 %v1698, %v1699
    %v1701 = vtanh.pop %v1700
    %v1702 = vrot.slane %v1690, 2
    %v1704 = vmul.f32 %v1702, %v1701
    %1705 = vst [vmem:[#allocation4 + $0x7] sm:$0x1] %v1704
    %v1706 = vld [vmem:[#allocation4] sm:$0xff]
    %v1707 = vpack.c.bf16 %v1706, %v1706
    %v1708 = vld [vmem:[#allocation13] sm:$0xf]
    %v1709 = vld [vmem:[#allocation13 + $0x4] sm:$0xf]
    %v1710 = vld [vmem:[#allocation13 + $0x8] sm:$0xf]
    %v1711 = vld [vmem:[#allocation13 + $0xc] sm:$0xf]
    %v1712 = vld [vmem:[#allocation13 + $0x10] sm:$0xf]
    %v1713 = vld [vmem:[#allocation13 + $0x14] sm:$0xf]
    %v1714 = vld [vmem:[#allocation13 + $0x18] sm:$0xf]
    %v1715 = vld [vmem:[#allocation13 + $0x1c] sm:$0xf]
    %v1716 = vld [vmem:[#allocation13 + $0x20] sm:$0xf]
    %v1717 = vld [vmem:[#allocation13 + $0x24] sm:$0xf]
    %v1718 = vld [vmem:[#allocation13 + $0x28] sm:$0xf]
    %v1719 = vld [vmem:[#allocation13 + $0x2c] sm:$0xf]
    %v1720 = vld [vmem:[#allocation13 + $0x30] sm:$0xf]
    %v1721 = vld [vmem:[#allocation13 + $0x34] sm:$0xf]
    %v1722 = vld [vmem:[#allocation13 + $0x38] sm:$0xf]
    %v1723 = vld [vmem:[#allocation13 + $0x3c] sm:$0xf]
    %v1724 = vld [vmem:[%s6] sm:$0x1]
    %v1726 = vlaneseq
    %v1727 = vshrl.u32 %v1726, 7
    %v1728 = vsub.s32 0, %v1727
    %v1729 = vrot.slane %v1724, %v1728
    %v1747 = vunpack.c.l.b16 %v1708
    %v1748 = vunpack.c.l.b16 %v1709
    %v1749 = vunpack.c.l.b16 %v1710
    %v1750 = vunpack.c.l.b16 %v1711
    %v1751 = vunpack.c.l.b16 %v1712
    %v1752 = vunpack.c.l.b16 %v1713
    %v1753 = vunpack.c.l.b16 %v1714
    %v1754 = vunpack.c.l.b16 %v1715
    %v1755 = vunpack.c.l.b16 %v1716
    %v1756 = vunpack.c.l.b16 %v1717
    %v1757 = vunpack.c.l.b16 %v1718
    %v1758 = vunpack.c.l.b16 %v1719
    %v1759 = vunpack.c.l.b16 %v1720
    %v1760 = vunpack.c.l.b16 %v1721
    %v1761 = vunpack.c.l.b16 %v1722
    %v1762 = vunpack.c.l.b16 %v1723
    %v1763 = vpack.c.b16 %v1748, %v1747
    %v1764 = vpack.c.b16 %v1750, %v1749
    %v1765 = vpack.c.b16 %v1752, %v1751
    %v1766 = vpack.c.b16 %v1754, %v1753
    %v1767 = vpack.c.b16 %v1756, %v1755
    %v1768 = vpack.c.b16 %v1758, %v1757
    %v1769 = vpack.c.b16 %v1760, %v1759
    %v1770 = vpack.c.b16 %v1762, %v1761
    %1779 = vmatprep.subr.bf16.mxu0 0
    %1780 = vmatpush1.bf16.msra.mxu0 %v1770
    %1781 = vmatprep.subr.bf16.mxu0 0
    %1782 = vmatpush1.bf16.msra.mxu0 %v1769
    %1783 = vmatprep.subr.bf16.mxu0 0
    %1784 = vmatpush1.bf16.msra.mxu0 %v1768
    %1785 = vmatprep.subr.bf16.mxu0 0
    %1786 = vmatpush1.bf16.msra.mxu0 %v1767
    %1787 = vmatprep.subr.bf16.mxu0 0
    %1788 = vmatpush1.bf16.msra.mxu0 %v1766
    %1789 = vmatprep.subr.bf16.mxu0 0
    %1790 = vmatpush1.bf16.msra.mxu0 %v1765
    %1791 = vmatprep.subr.bf16.mxu0 0
    %1792 = vmatpush1.bf16.msra.mxu0 %v1764
    %1793 = vmatprep.subr.bf16.mxu0 0
    %1794 = vmatpush1.bf16.msra.mxu0 %v1763
    %1795 = vmatprep.subr.bf16.mxu0 0
    %1796 = vmatpush2.bf16.msra.mxu0 0
    %1797 = vmatprep.subr.bf16.mxu0 0
    %1798 = vmatpush2.bf16.msra.mxu0 0
    %1799 = vmatprep.subr.bf16.mxu0 0
    %1800 = vmatpush2.bf16.msra.mxu0 0
    %1801 = vmatprep.subr.bf16.mxu0 0
    %1802 = vmatpush2.bf16.msra.mxu0 0
    %1803 = vmatprep.subr.bf16.mxu0 0
    %1804 = vmatpush2.bf16.msra.mxu0 0
    %1805 = vmatprep.subr.bf16.mxu0 0
    %1806 = vmatpush2.bf16.msra.mxu0 0
    %1807 = vmatprep.subr.bf16.mxu0 0
    %1808 = vmatpush2.bf16.msra.mxu0 0
    %1809 = vmatprep.subr.bf16.mxu0 0
    %1810 = vmatpush2.bf16.msra.mxu0 0
    %1811 = vmatprep.mubr.bf16.mxu0 0
    %1812 = vmatmul.mubr.bf16.gmra.mxu0 %v1707
    %v1813 = vpop.f32.mrf.mxu0
    %v1814 = vadd.f32 %v1729, %v1813
    %v1815 = vpop.f32.mrf.mxu0
    %v1816 = vpop.f32.mrf.mxu0
    %v1817 = vpop.f32.mrf.mxu0
    %1818 = vdwg.mxu0
    %1819 = vmax.xlane.f32.xlu0 %v1814
    %v1820 = vpop.xlane.xlu0 %1819
    %v1821 = vsub.f32 %v1814, %v1820
    %v1822 = vmul.f32 %v1821, 1.442695
    %v1823 = vpow.pop %v1822
    %1824 = vadd.xlane.f32.xlu0 %v1823
    %v1825 = vpop.xlane.xlu0 %1824
    %v1826 = vlog2.pop %v1825
    %v1827 = vmul.f32 %v1826, 0.6931472
    %v1828 = vadd.f32 %v1820, %v1827
    %v1829 = vsub.f32 %v1814, %v1828
    %1830 = vst [vmem:[#allocation15] sm:$0xff] %v1829
    // Predicated region
    $region50: #{lstm_tagger_forward.1} parent=1 // pred_check
      _
    $region51: #{lstm_tagger_forward.1} parent=1 // pred_check_branch
      %1832 = sbr.rel (0) target = $region53
    $region52: #{lstm_tagger_forward.1} parent=1 // pred_region
      %s1834 = ssub.s32 128, 128
      %1835 = vsyncadd [#allocation7], %s1834
      %s1837 = sshll.u32 [#allocation15], 4
      %s1838 = int_to_ptr.vmem [resolvable:$true] %s1837
      %1840 = dma.vmem_to_hbm [thread:$0]  %s1838, 128, %s7, [#allocation7]
    $region53: #{lstm_tagger_forward.1} parent=1 // pred_fallthru
      _
    // Predicated region
    $region54: #{lstm_tagger_forward.1} parent=1 // pred_check
      _
    $region55: #{lstm_tagger_forward.1} parent=1 // pred_check_branch
      %1842 = sbr.rel (0) target = $region57
    $region56: #{lstm_tagger_forward.1} parent=1 // pred_region
      %1843 = dma.done [#allocation7], 128
    $region57: #{lstm_tagger_forward.1} parent=1 // pred_fallthru
      _
    %1844 = vsyncpa [#allocation6], 1
    %1845 = vsyncpa [#allocation11], 1
    %1846 = vsyncpa [#allocation14], 1
    %1847 = vsyncpa [#allocation7], 1
    %1848 = vsyncpa [#allocation8], 1

</llo_original>
